<compile_context>
chip_gen: v7x
topology: tpu7x:2x2x1
jax: 0.10.0
libtpu: 0.0.40
codegen_flags: <defaults>
</compile_context>

<pallas_src>
import functools

import jax
import jax.numpy as jnp
from jax.experimental import pallas as pl
from jax.experimental.pallas import tpu as pltpu

EPS = 1e-5


def _round_up(v: int, m: int) -> int:
    return ((v + m - 1) // m) * m


def _embed_kernel(
    x_ref,
    w1_ref, b1_ref, g1_ref, be1_ref,
    w2_ref, b2_ref, g2_ref, be2_ref,
    w3_ref, b3_ref, g3_ref, be3_ref,
    o_ref,
    *,
    cout: int,
):
    # Hoist all parameter reads once per grid step (JAX does not CSE
    # broadcast_in_dim, so never re-materialize these per use).
    w1 = w1_ref[...]; b1 = b1_ref[...]; g1 = g1_ref[...]; be1 = be1_ref[...]
    w2 = w2_ref[...]; b2 = b2_ref[...]; g2 = g2_ref[...]; be2 = be2_ref[...]
    w3 = w3_ref[...]; b3 = b3_ref[...]; g3 = g3_ref[...]; be3 = be3_ref[...]

    cout_pad = o_ref.shape[-1]
    n_pad = cout_pad - cout
    inv_c = 1.0 / float(cout)          # static reciprocal of the *real* width
    mxu_dtype = w1.dtype               # bf16 operands, f32 accumulation

    def layernorm(h, gamma, beta):
        # Padded lanes of h are exactly zero (zero-padded weight columns and
        # biases), so sum(h) over the padded width equals the sum over the real
        # Cout.  Each zero pad lane contributes mean^2 to the centered sum of
        # squares, so correct with a scalar term instead of a per-lane mask.
        mean = jnp.sum(h, axis=-1, keepdims=True) * inv_c
        centered = h - mean
        sq = jnp.sum(centered * centered, axis=-1, keepdims=True)
        if n_pad:
            sq = jnp.maximum(sq - float(n_pad) * (mean * mean), 0.0)
        inv = jax.lax.rsqrt(sq * inv_c + EPS)
        # gamma / beta are zero-padded, so padded output lanes stay exactly 0.
        return centered * inv * gamma + beta

    # Block 1: Linear -> LayerNorm -> ReLU
    h = jnp.dot(x_ref[...].astype(mxu_dtype), w1,
                preferred_element_type=jnp.float32) + b1
    h = jnp.maximum(layernorm(h, g1, be1), 0.0)

    # Block 2: Linear -> LayerNorm -> ReLU
    h = jnp.dot(h.astype(mxu_dtype), w2, preferred_element_type=jnp.float32) + b2
    h = jnp.maximum(layernorm(h, g2, be2), 0.0)

    # Block 3: Linear -> LayerNorm
    h = jnp.dot(h.astype(mxu_dtype), w3, preferred_element_type=jnp.float32) + b3
    h = layernorm(h, g3, be3)

    o_ref[...] = h.astype(o_ref.dtype)


def _choose_tile_rows(n: int, cin: int, cout_p: int, vmem_budget_bytes: int) -> int:
    # Per-row working set: double-buffered f32 x tile + double-buffered f32 out
    # tile + ~4 live f32 (tn, cout_p) activation temporaries + 1 bf16 dot copy.
    per_row = 4 * (2 * cin + 2 * cout_p + 4 * cout_p) + 2 * (cin + cout_p)
    tn = min(512, max(8, vmem_budget_bytes // per_row))
    if tn >= 256:
        tn -= tn % 256
    else:
        tn -= tn % 8
    # Guarantee a multi-step grid: pipeline overlap everywhere, and lets the
    # "parallel" axis shard across v7x's two TensorCores.
    if n >= 32:
        tn = min(tn, _round_up(pl.cdiv(n, 4), 8))
    elif n > 8:
        tn = min(tn, _round_up(pl.cdiv(n, 2), 8))
    return max(8, min(tn, _round_up(n, 8)))


def single_input_embedding(x, params, *, mxu_dtype=jnp.bfloat16, trim_lanes=True):
    """x: [N, Cin] float32.  params: dict of weights (see init_params)."""
    n, cin = x.shape
    cout = params["w1"].shape[1]
    cout_p = _round_up(max(cout, 1), 128)   # lane-dense output width

    # Zero-pad parameters along feature (lane) dims only.  Weights feed the MXU
    # in bf16; LayerNorm vectors stay f32.  x itself is NOT padded/copied.
    def pad2(a, r, c, dtype):
        out = jnp.zeros((r, c), dtype)
        return out.at[: a.shape[0], : a.shape[1]].set(a.astype(dtype))

    w1 = pad2(params["w1"], cin, cout_p, mxu_dtype)
    w2 = pad2(params["w2"], cout_p, cout_p, mxu_dtype)
    w3 = pad2(params["w3"], cout_p, cout_p, mxu_dtype)
    b1 = pad2(params["b1"], 1, cout_p, jnp.float32)
    b2 = pad2(params["b2"], 1, cout_p, jnp.float32)
    b3 = pad2(params["b3"], 1, cout_p, jnp.float32)
    g1 = pad2(params["g1"], 1, cout_p, jnp.float32)
    g2 = pad2(params["g2"], 1, cout_p, jnp.float32)
    g3 = pad2(params["g3"], 1, cout_p, jnp.float32)
    be1 = pad2(params["be1"], 1, cout_p, jnp.float32)
    be2 = pad2(params["be2"], 1, cout_p, jnp.float32)
    be3 = pad2(params["be3"], 1, cout_p, jnp.float32)

    param_args = (w1, b1, g1, be1, w2, b2, g2, be2, w3, b3, g3, be3)
    param_bytes = sum(int(a.size) * a.dtype.itemsize for a in param_args)

    # Budget-driven row tile from the actual chip's VMEM capacity.
    try:
        vmem_cap = int(pltpu.get_tpu_info().vmem_capacity_bytes)
    except Exception:
        vmem_cap = 64 * 1024 * 1024   # conservative (v7x per-TensorCore)
    budget = max(int(0.6 * vmem_cap) - 2 * param_bytes, 4 * 1024 * 1024)
    tn = _choose_tile_rows(n, cin, cout_p, budget)
    grid = (pl.cdiv(n, tn),)

    cost = pl.CostEstimate(
        flops=2 * n * (cin * cout_p + 2 * cout_p * cout_p),
        transcendentals=3 * n,                       # one rsqrt per row per LN
        bytes_accessed=4 * n * (cin + cout_p) + param_bytes,
    )

    kernel = functools.partial(_embed_kernel, cout=cout)
    x_spec = pl.BlockSpec((tn, cin), lambda i: (i, 0))
    out_spec = pl.BlockSpec((tn, cout_p), lambda i: (i, 0))
    out_shape = jax.ShapeDtypeStruct((n, cout_p), x.dtype)

    def const_spec(a, single_buffer):
        nd = a.ndim
        idx = lambda i, _nd=nd: (0,) * _nd           # VMEM-resident across grid
        if single_buffer:
            # Params never change across grid steps: single-buffer them so
            # weights are not duplicated in VMEM (matters on v7x's 64 MiB).
            return pl.BlockSpec(a.shape, idx, pipeline_mode=pl.Buffered(1))
        return pl.BlockSpec(a.shape, idx)

    def run(single_buffer):
        bufs = 1 if single_buffer else 2
        vmem_need = (
            bufs * param_bytes
            + 2 * tn * cin * 4          # double-buffered input tile (f32)
            + 2 * tn * cout_p * 4       # double-buffered output tile (f32)
            + 4 * tn * cout_p * 4       # live f32 activation temporaries
            + tn * cout_p * 2           # bf16 dot-operand copy
        )
        vmem_limit = int(min(int(0.9 * vmem_cap), max(2 * vmem_need, 32 * 1024 * 1024)))
        return pl.pallas_call(
            kernel,
            out_shape=out_shape,
            grid=grid,
            in_specs=[x_spec] + [const_spec(a, single_buffer) for a in param_args],
            out_specs=out_spec,
            compiler_params=pltpu.CompilerParams(
                dimension_semantics=("parallel",),
                vmem_limit_bytes=vmem_limit,
            ),
            cost_estimate=cost,
        )(x, *param_args)

    try:
        out_p = run(single_buffer=True)
    except Exception:
        # Fallback for Pallas versions that reject Buffered(1) on inputs.
        out_p = run(single_buffer=False)

    if trim_lanes and cout_p != cout:
        # Only extra HBM pass left; skipped entirely when Cout % 128 == 0, and
        # downstream consumers can take the padded slab via trim_lanes=False.
        return out_p[:, :cout]
    return out_p


def init_params(key, cin, cout):
    """Deterministic synthetic parameters (shapes match nn.Linear / nn.LayerNorm)."""
    ks = jax.random.split(key, 6)

    def lin(kw, kb, fan_in, fan_out):
        bound = 1.0 / jnp.sqrt(fan_in)
        w = jax.random.uniform(kw, (fan_in, fan_out), jnp.float32, -bound, bound)
        b = jax.random.uniform(kb, (1, fan_out), jnp.float32, -bound, bound)
        return w, b

    w1, b1 = lin(ks[0], ks[1], cin, cout)
    w2, b2 = lin(ks[2], ks[3], cout, cout)
    w3, b3 = lin(ks[4], ks[5], cout, cout)
    ones = jnp.ones((1, cout), jnp.float32)
    zeros = jnp.zeros((1, cout), jnp.float32)
    return dict(
        w1=w1, b1=b1, g1=ones, be1=zeros,
        w2=w2, b2=b2, g2=ones, be2=zeros,
        w3=w3, b3=b3, g3=ones, be3=zeros,
    )


def reference(x, p, matmul_dtype=jnp.float32):
    """Pure-JAX reference of the PyTorch module, with selectable matmul precision."""
    def ln(h, g, b):
        m = jnp.mean(h, axis=-1, keepdims=True)
        v = jnp.mean((h - m) ** 2, axis=-1, keepdims=True)
        return (h - m) * jax.lax.rsqrt(v + EPS) * g + b

    def mm(a, w):
        return jnp.dot(a.astype(matmul_dtype), w.astype(matmul_dtype),
                       preferred_element_type=jnp.float32)

    h = mm(x, p["w1"]) + p["b1"]
    h = jnp.maximum(ln(h, p["g1"], p["be1"]), 0.0)
    h = mm(h, p["w2"]) + p["b2"]
    h = jnp.maximum(ln(h, p["g2"], p["be2"]), 0.0)
    h = mm(h, p["w3"]) + p["b3"]
    return ln(h, p["g3"], p["be3"])


if __name__ == "__main__":
    key = jax.random.PRNGKey(0)
    kx, kp = jax.random.split(key)

    N, CIN, COUT = 16, 8, 32
    x = jax.random.normal(kx, (N, CIN), jnp.float32)
    params = init_params(kp, CIN, COUT)

    out = single_input_embedding(x, params)
    out = jax.block_until_ready(out)
    assert out.shape == (N, COUT)

    # The kernel runs its matmuls with bf16 MXU operands (f32 accumulation and
    # f32 LayerNorm math), so validate against a reference using the same
    # matmul precision; any remaining difference is kernel structure, not the
    # (intentional) bf16 quantization of the MXU inputs.
    ref = reference(x, params, matmul_dtype=jnp.bfloat16)
    err = float(jnp.max(jnp.abs(out - ref)))
    assert jnp.allclose(out, ref, atol=5e-3, rtol=5e-3), err

    print("KERNEL_OK")
</pallas_src>

<mosaic_0001>
module attributes {stable_mosaic.version = 11 : i64} {
  func.func @_embed_kernel(%arg0: i32, %arg1: memref<8x8xf32, #tpu.memory_space<vmem>>, %arg2: memref<8x128xbf16, #tpu.memory_space<vmem>>, %arg3: memref<1x128xf32, #tpu.memory_space<vmem>>, %arg4: memref<1x128xf32, #tpu.memory_space<vmem>>, %arg5: memref<1x128xf32, #tpu.memory_space<vmem>>, %arg6: memref<128x128xbf16, #tpu.memory_space<vmem>>, %arg7: memref<1x128xf32, #tpu.memory_space<vmem>>, %arg8: memref<1x128xf32, #tpu.memory_space<vmem>>, %arg9: memref<1x128xf32, #tpu.memory_space<vmem>>, %arg10: memref<128x128xbf16, #tpu.memory_space<vmem>>, %arg11: memref<1x128xf32, #tpu.memory_space<vmem>>, %arg12: memref<1x128xf32, #tpu.memory_space<vmem>>, %arg13: memref<1x128xf32, #tpu.memory_space<vmem>>, %arg14: memref<8x128xf32, #tpu.memory_space<vmem>>) attributes {dimension_semantics = [#tpu.dimension_semantics<parallel>], iteration_bounds = array<i64: 2>, scalar_prefetch = 0 : i64, scratch_operands = 0 : i64, tpu.core_type = #tpu.core_type<tc>, window_params = [{transform_indices = @transform_0, window_bounds = array<i64: 8, 8>}, {pipeline_mode = #tpu.pipeline_mode<synchronous>, transform_indices = @transform_1, window_bounds = array<i64: 8, 128>}, {pipeline_mode = #tpu.pipeline_mode<synchronous>, transform_indices = @transform_2, window_bounds = array<i64: 1, 128>}, {pipeline_mode = #tpu.pipeline_mode<synchronous>, transform_indices = @transform_3, window_bounds = array<i64: 1, 128>}, {pipeline_mode = #tpu.pipeline_mode<synchronous>, transform_indices = @transform_4, window_bounds = array<i64: 1, 128>}, {pipeline_mode = #tpu.pipeline_mode<synchronous>, transform_indices = @transform_5, window_bounds = array<i64: 128, 128>}, {pipeline_mode = #tpu.pipeline_mode<synchronous>, transform_indices = @transform_6, window_bounds = array<i64: 1, 128>}, {pipeline_mode = #tpu.pipeline_mode<synchronous>, transform_indices = @transform_7, window_bounds = array<i64: 1, 128>}, {pipeline_mode = #tpu.pipeline_mode<synchronous>, transform_indices = @transform_8, window_bounds = array<i64: 1, 128>}, {pipeline_mode = #tpu.pipeline_mode<synchronous>, transform_indices = @transform_9, window_bounds = array<i64: 128, 128>}, {pipeline_mode = #tpu.pipeline_mode<synchronous>, transform_indices = @transform_10, window_bounds = array<i64: 1, 128>}, {pipeline_mode = #tpu.pipeline_mode<synchronous>, transform_indices = @transform_11, window_bounds = array<i64: 1, 128>}, {pipeline_mode = #tpu.pipeline_mode<synchronous>, transform_indices = @transform_12, window_bounds = array<i64: 1, 128>}, {transform_indices = @transform_13, window_bounds = array<i64: 8, 128>}]} {
    %c0 = arith.constant 0 : index
    %c0_0 = arith.constant 0 : index
    %0 = vector.load %arg2[%c0, %c0_0] : memref<8x128xbf16, #tpu.memory_space<vmem>>, vector<8x128xbf16>
    %c0_1 = arith.constant 0 : index
    %c0_2 = arith.constant 0 : index
    %1 = vector.load %arg3[%c0_1, %c0_2] : memref<1x128xf32, #tpu.memory_space<vmem>>, vector<1x128xf32>
    %c0_3 = arith.constant 0 : index
    %c0_4 = arith.constant 0 : index
    %2 = vector.load %arg4[%c0_3, %c0_4] : memref<1x128xf32, #tpu.memory_space<vmem>>, vector<1x128xf32>
    %c0_5 = arith.constant 0 : index
    %c0_6 = arith.constant 0 : index
    %3 = vector.load %arg5[%c0_5, %c0_6] : memref<1x128xf32, #tpu.memory_space<vmem>>, vector<1x128xf32>
    %c0_7 = arith.constant 0 : index
    %c0_8 = arith.constant 0 : index
    %4 = vector.load %arg6[%c0_7, %c0_8] : memref<128x128xbf16, #tpu.memory_space<vmem>>, vector<128x128xbf16>
    %c0_9 = arith.constant 0 : index
    %c0_10 = arith.constant 0 : index
    %5 = vector.load %arg7[%c0_9, %c0_10] : memref<1x128xf32, #tpu.memory_space<vmem>>, vector<1x128xf32>
    %c0_11 = arith.constant 0 : index
    %c0_12 = arith.constant 0 : index
    %6 = vector.load %arg8[%c0_11, %c0_12] : memref<1x128xf32, #tpu.memory_space<vmem>>, vector<1x128xf32>
    %c0_13 = arith.constant 0 : index
    %c0_14 = arith.constant 0 : index
    %7 = vector.load %arg9[%c0_13, %c0_14] : memref<1x128xf32, #tpu.memory_space<vmem>>, vector<1x128xf32>
    %c0_15 = arith.constant 0 : index
    %c0_16 = arith.constant 0 : index
    %8 = vector.load %arg10[%c0_15, %c0_16] : memref<128x128xbf16, #tpu.memory_space<vmem>>, vector<128x128xbf16>
    %c0_17 = arith.constant 0 : index
    %c0_18 = arith.constant 0 : index
    %9 = vector.load %arg11[%c0_17, %c0_18] : memref<1x128xf32, #tpu.memory_space<vmem>>, vector<1x128xf32>
    %c0_19 = arith.constant 0 : index
    %c0_20 = arith.constant 0 : index
    %10 = vector.load %arg12[%c0_19, %c0_20] : memref<1x128xf32, #tpu.memory_space<vmem>>, vector<1x128xf32>
    %c0_21 = arith.constant 0 : index
    %c0_22 = arith.constant 0 : index
    %11 = vector.load %arg13[%c0_21, %c0_22] : memref<1x128xf32, #tpu.memory_space<vmem>>, vector<1x128xf32>
    %c0_23 = arith.constant 0 : index
    %c0_24 = arith.constant 0 : index
    %12 = vector.load %arg1[%c0_23, %c0_24] : memref<8x8xf32, #tpu.memory_space<vmem>>, vector<8x8xf32>
    %13 = arith.truncf %12 : vector<8x8xf32> to vector<8x8xbf16>
    %cst = arith.constant dense<0.000000e+00> : vector<8x128xf32>
    %14 = tpu.matmul %13, %0, %cst {dimension_numbers = #tpu.dot_dimension_numbers<[1], [0], [0], [1], [0, 0, 1, 1], [], []>} : vector<8x8xbf16>, vector<8x128xbf16>, vector<8x128xf32> -> vector<8x128xf32>
    %15 = vector.broadcast %1 : vector<1x128xf32> to vector<8x128xf32>
    %16 = arith.addf %14, %15 : vector<8x128xf32>
    %cst_25 = arith.constant dense<0.000000e+00> : vector<8xf32>
    %17 = vector.multi_reduction <add>, %16, %cst_25 [1] : vector<8x128xf32> to vector<8xf32>
    %18 = vector.shape_cast %17 : vector<8xf32> to vector<8x1xf32>
    %cst_26 = arith.constant 3.125000e-02 : f32
    %19 = vector.broadcast %cst_26 : f32 to vector<8x1xf32>
    %20 = arith.mulf %18, %19 : vector<8x1xf32>
    %21 = vector.broadcast %20 : vector<8x1xf32> to vector<8x128xf32>
    %22 = arith.subf %16, %21 : vector<8x128xf32>
    %23 = arith.mulf %22, %22 : vector<8x128xf32>
    %cst_27 = arith.constant dense<0.000000e+00> : vector<8xf32>
    %24 = vector.multi_reduction <add>, %23, %cst_27 [1] : vector<8x128xf32> to vector<8xf32>
    %25 = vector.shape_cast %24 : vector<8xf32> to vector<8x1xf32>
    %26 = arith.mulf %20, %20 : vector<8x1xf32>
    %cst_28 = arith.constant 9.600000e+01 : f32
    %27 = vector.broadcast %cst_28 : f32 to vector<8x1xf32>
    %28 = arith.mulf %27, %26 : vector<8x1xf32>
    %29 = arith.subf %25, %28 : vector<8x1xf32>
    %cst_29 = arith.constant 0.000000e+00 : f32
    %30 = vector.broadcast %cst_29 : f32 to vector<8x1xf32>
    %31 = arith.maximumf %29, %30 : vector<8x1xf32>
    %cst_30 = arith.constant 3.125000e-02 : f32
    %32 = vector.broadcast %cst_30 : f32 to vector<8x1xf32>
    %33 = arith.mulf %31, %32 : vector<8x1xf32>
    %cst_31 = arith.constant 9.99999974E-6 : f32
    %34 = vector.broadcast %cst_31 : f32 to vector<8x1xf32>
    %35 = arith.addf %33, %34 : vector<8x1xf32>
    %36 = math.rsqrt %35 : vector<8x1xf32>
    %37 = vector.broadcast %36 : vector<8x1xf32> to vector<8x128xf32>
    %38 = arith.mulf %22, %37 : vector<8x128xf32>
    %39 = vector.broadcast %2 : vector<1x128xf32> to vector<8x128xf32>
    %40 = arith.mulf %38, %39 : vector<8x128xf32>
    %41 = vector.broadcast %3 : vector<1x128xf32> to vector<8x128xf32>
    %42 = arith.addf %40, %41 : vector<8x128xf32>
    %cst_32 = arith.constant 0.000000e+00 : f32
    %43 = vector.broadcast %cst_32 : f32 to vector<8x128xf32>
    %44 = arith.maximumf %42, %43 : vector<8x128xf32>
    %45 = arith.truncf %44 : vector<8x128xf32> to vector<8x128xbf16>
    %cst_33 = arith.constant dense<0.000000e+00> : vector<8x128xf32>
    %46 = tpu.matmul %45, %4, %cst_33 {dimension_numbers = #tpu.dot_dimension_numbers<[1], [0], [0], [1], [0, 0, 1, 1], [], []>} : vector<8x128xbf16>, vector<128x128xbf16>, vector<8x128xf32> -> vector<8x128xf32>
    %47 = vector.broadcast %5 : vector<1x128xf32> to vector<8x128xf32>
    %48 = arith.addf %46, %47 : vector<8x128xf32>
    %cst_34 = arith.constant dense<0.000000e+00> : vector<8xf32>
    %49 = vector.multi_reduction <add>, %48, %cst_34 [1] : vector<8x128xf32> to vector<8xf32>
    %50 = vector.shape_cast %49 : vector<8xf32> to vector<8x1xf32>
    %cst_35 = arith.constant 3.125000e-02 : f32
    %51 = vector.broadcast %cst_35 : f32 to vector<8x1xf32>
    %52 = arith.mulf %50, %51 : vector<8x1xf32>
    %53 = vector.broadcast %52 : vector<8x1xf32> to vector<8x128xf32>
    %54 = arith.subf %48, %53 : vector<8x128xf32>
    %55 = arith.mulf %54, %54 : vector<8x128xf32>
    %cst_36 = arith.constant dense<0.000000e+00> : vector<8xf32>
    %56 = vector.multi_reduction <add>, %55, %cst_36 [1] : vector<8x128xf32> to vector<8xf32>
    %57 = vector.shape_cast %56 : vector<8xf32> to vector<8x1xf32>
    %58 = arith.mulf %52, %52 : vector<8x1xf32>
    %cst_37 = arith.constant 9.600000e+01 : f32
    %59 = vector.broadcast %cst_37 : f32 to vector<8x1xf32>
    %60 = arith.mulf %59, %58 : vector<8x1xf32>
    %61 = arith.subf %57, %60 : vector<8x1xf32>
    %cst_38 = arith.constant 0.000000e+00 : f32
    %62 = vector.broadcast %cst_38 : f32 to vector<8x1xf32>
    %63 = arith.maximumf %61, %62 : vector<8x1xf32>
    %cst_39 = arith.constant 3.125000e-02 : f32
    %64 = vector.broadcast %cst_39 : f32 to vector<8x1xf32>
    %65 = arith.mulf %63, %64 : vector<8x1xf32>
    %cst_40 = arith.constant 9.99999974E-6 : f32
    %66 = vector.broadcast %cst_40 : f32 to vector<8x1xf32>
    %67 = arith.addf %65, %66 : vector<8x1xf32>
    %68 = math.rsqrt %67 : vector<8x1xf32>
    %69 = vector.broadcast %68 : vector<8x1xf32> to vector<8x128xf32>
    %70 = arith.mulf %54, %69 : vector<8x128xf32>
    %71 = vector.broadcast %6 : vector<1x128xf32> to vector<8x128xf32>
    %72 = arith.mulf %70, %71 : vector<8x128xf32>
    %73 = vector.broadcast %7 : vector<1x128xf32> to vector<8x128xf32>
    %74 = arith.addf %72, %73 : vector<8x128xf32>
    %cst_41 = arith.constant 0.000000e+00 : f32
    %75 = vector.broadcast %cst_41 : f32 to vector<8x128xf32>
    %76 = arith.maximumf %74, %75 : vector<8x128xf32>
    %77 = arith.truncf %76 : vector<8x128xf32> to vector<8x128xbf16>
    %cst_42 = arith.constant dense<0.000000e+00> : vector<8x128xf32>
    %78 = tpu.matmul %77, %8, %cst_42 {dimension_numbers = #tpu.dot_dimension_numbers<[1], [0], [0], [1], [0, 0, 1, 1], [], []>} : vector<8x128xbf16>, vector<128x128xbf16>, vector<8x128xf32> -> vector<8x128xf32>
    %79 = vector.broadcast %9 : vector<1x128xf32> to vector<8x128xf32>
    %80 = arith.addf %78, %79 : vector<8x128xf32>
    %cst_43 = arith.constant dense<0.000000e+00> : vector<8xf32>
    %81 = vector.multi_reduction <add>, %80, %cst_43 [1] : vector<8x128xf32> to vector<8xf32>
    %82 = vector.shape_cast %81 : vector<8xf32> to vector<8x1xf32>
    %cst_44 = arith.constant 3.125000e-02 : f32
    %83 = vector.broadcast %cst_44 : f32 to vector<8x1xf32>
    %84 = arith.mulf %82, %83 : vector<8x1xf32>
    %85 = vector.broadcast %84 : vector<8x1xf32> to vector<8x128xf32>
    %86 = arith.subf %80, %85 : vector<8x128xf32>
    %87 = arith.mulf %86, %86 : vector<8x128xf32>
    %cst_45 = arith.constant dense<0.000000e+00> : vector<8xf32>
    %88 = vector.multi_reduction <add>, %87, %cst_45 [1] : vector<8x128xf32> to vector<8xf32>
    %89 = vector.shape_cast %88 : vector<8xf32> to vector<8x1xf32>
    %90 = arith.mulf %84, %84 : vector<8x1xf32>
    %cst_46 = arith.constant 9.600000e+01 : f32
    %91 = vector.broadcast %cst_46 : f32 to vector<8x1xf32>
    %92 = arith.mulf %91, %90 : vector<8x1xf32>
    %93 = arith.subf %89, %92 : vector<8x1xf32>
    %cst_47 = arith.constant 0.000000e+00 : f32
    %94 = vector.broadcast %cst_47 : f32 to vector<8x1xf32>
    %95 = arith.maximumf %93, %94 : vector<8x1xf32>
    %cst_48 = arith.constant 3.125000e-02 : f32
    %96 = vector.broadcast %cst_48 : f32 to vector<8x1xf32>
    %97 = arith.mulf %95, %96 : vector<8x1xf32>
    %cst_49 = arith.constant 9.99999974E-6 : f32
    %98 = vector.broadcast %cst_49 : f32 to vector<8x1xf32>
    %99 = arith.addf %97, %98 : vector<8x1xf32>
    %100 = math.rsqrt %99 : vector<8x1xf32>
    %101 = vector.broadcast %100 : vector<8x1xf32> to vector<8x128xf32>
    %102 = arith.mulf %86, %101 : vector<8x128xf32>
    %103 = vector.broadcast %10 : vector<1x128xf32> to vector<8x128xf32>
    %104 = arith.mulf %102, %103 : vector<8x128xf32>
    %105 = vector.broadcast %11 : vector<1x128xf32> to vector<8x128xf32>
    %106 = arith.addf %104, %105 : vector<8x128xf32>
    %c0_50 = arith.constant 0 : index
    %c0_51 = arith.constant 0 : index
    %107 = vector.load %arg14[%c0_50, %c0_51] : memref<8x128xf32, #tpu.memory_space<vmem>>, vector<8x128xf32>
    tpu.vector_store %arg14[%c0_50, %c0_51], %106 {strides = array<i32>} : memref<8x128xf32, #tpu.memory_space<vmem>>, vector<8x128xf32>,
    return
  }
  func.func @transform_0(%arg0: i32) -> (i32, i32) {
    %c0_i32 = arith.constant 0 : i32
    %c0_i32_0 = arith.constant 0 : i32
    return %arg0, %c0_i32 : i32, i32
  }
  func.func @transform_1(%arg0: i32) -> (i32, i32) {
    %c0_i32 = arith.constant 0 : i32
    %c0_i32_0 = arith.constant 0 : i32
    %c0_i32_1 = arith.constant 0 : i32
    return %c0_i32, %c0_i32_0 : i32, i32
  }
  func.func @transform_2(%arg0: i32) -> (i32, i32) {
    %c0_i32 = arith.constant 0 : i32
    %c0_i32_0 = arith.constant 0 : i32
    %c0_i32_1 = arith.constant 0 : i32
    return %c0_i32, %c0_i32_0 : i32, i32
  }
  func.func @transform_3(%arg0: i32) -> (i32, i32) {
    %c0_i32 = arith.constant 0 : i32
    %c0_i32_0 = arith.constant 0 : i32
    %c0_i32_1 = arith.constant 0 : i32
    return %c0_i32, %c0_i32_0 : i32, i32
  }
  func.func @transform_4(%arg0: i32) -> (i32, i32) {
    %c0_i32 = arith.constant 0 : i32
    %c0_i32_0 = arith.constant 0 : i32
    %c0_i32_1 = arith.constant 0 : i32
    return %c0_i32, %c0_i32_0 : i32, i32
  }
  func.func @transform_5(%arg0: i32) -> (i32, i32) {
    %c0_i32 = arith.constant 0 : i32
    %c0_i32_0 = arith.constant 0 : i32
    %c0_i32_1 = arith.constant 0 : i32
    return %c0_i32, %c0_i32_0 : i32, i32
  }
  func.func @transform_6(%arg0: i32) -> (i32, i32) {
    %c0_i32 = arith.constant 0 : i32
    %c0_i32_0 = arith.constant 0 : i32
    %c0_i32_1 = arith.constant 0 : i32
    return %c0_i32, %c0_i32_0 : i32, i32
  }
  func.func @transform_7(%arg0: i32) -> (i32, i32) {
    %c0_i32 = arith.constant 0 : i32
    %c0_i32_0 = arith.constant 0 : i32
    %c0_i32_1 = arith.constant 0 : i32
    return %c0_i32, %c0_i32_0 : i32, i32
  }
  func.func @transform_8(%arg0: i32) -> (i32, i32) {
    %c0_i32 = arith.constant 0 : i32
    %c0_i32_0 = arith.constant 0 : i32
    %c0_i32_1 = arith.constant 0 : i32
    return %c0_i32, %c0_i32_0 : i32, i32
  }
  func.func @transform_9(%arg0: i32) -> (i32, i32) {
    %c0_i32 = arith.constant 0 : i32
    %c0_i32_0 = arith.constant 0 : i32
    %c0_i32_1 = arith.constant 0 : i32
    return %c0_i32, %c0_i32_0 : i32, i32
  }
  func.func @transform_10(%arg0: i32) -> (i32, i32) {
    %c0_i32 = arith.constant 0 : i32
    %c0_i32_0 = arith.constant 0 : i32
    %c0_i32_1 = arith.constant 0 : i32
    return %c0_i32, %c0_i32_0 : i32, i32
  }
  func.func @transform_11(%arg0: i32) -> (i32, i32) {
    %c0_i32 = arith.constant 0 : i32
    %c0_i32_0 = arith.constant 0 : i32
    %c0_i32_1 = arith.constant 0 : i32
    return %c0_i32, %c0_i32_0 : i32, i32
  }
  func.func @transform_12(%arg0: i32) -> (i32, i32) {
    %c0_i32 = arith.constant 0 : i32
    %c0_i32_0 = arith.constant 0 : i32
    %c0_i32_1 = arith.constant 0 : i32
    return %c0_i32, %c0_i32_0 : i32, i32
  }
  func.func @transform_13(%arg0: i32) -> (i32, i32) {
    %c0_i32 = arith.constant 0 : i32
    %c0_i32_0 = arith.constant 0 : i32
    return %arg0, %c0_i32 : i32, i32
  }
}

module attributes {stable_mosaic.version = 11 : i64} {
  func.func @_embed_kernel(%arg0: i32, %arg1: memref<8x8xf32, #tpu.memory_space<vmem>>, %arg2: memref<8x128xbf16, #tpu.memory_space<vmem>>, %arg3: memref<1x128xf32, #tpu.memory_space<vmem>>, %arg4: memref<1x128xf32, #tpu.memory_space<vmem>>, %arg5: memref<1x128xf32, #tpu.memory_space<vmem>>, %arg6: memref<128x128xbf16, #tpu.memory_space<vmem>>, %arg7: memref<1x128xf32, #tpu.memory_space<vmem>>, %arg8: memref<1x128xf32, #tpu.memory_space<vmem>>, %arg9: memref<1x128xf32, #tpu.memory_space<vmem>>, %arg10: memref<128x128xbf16, #tpu.memory_space<vmem>>, %arg11: memref<1x128xf32, #tpu.memory_space<vmem>>, %arg12: memref<1x128xf32, #tpu.memory_space<vmem>>, %arg13: memref<1x128xf32, #tpu.memory_space<vmem>>, %arg14: memref<8x128xf32, #tpu.memory_space<vmem>>) attributes {dimension_semantics = [#tpu.dimension_semantics<parallel>], iteration_bounds = array<i64: 2>, scalar_prefetch = 0 : i64, scratch_operands = 0 : i64, tpu.core_type = #tpu.core_type<tc>, window_params = [{transform_indices = @transform_0, window_bounds = array<i64: 8, 8>}, {pipeline_mode = #tpu.pipeline_mode<synchronous>, transform_indices = @transform_1, window_bounds = array<i64: 8, 128>}, {pipeline_mode = #tpu.pipeline_mode<synchronous>, transform_indices = @transform_2, window_bounds = array<i64: 1, 128>}, {pipeline_mode = #tpu.pipeline_mode<synchronous>, transform_indices = @transform_3, window_bounds = array<i64: 1, 128>}, {pipeline_mode = #tpu.pipeline_mode<synchronous>, transform_indices = @transform_4, window_bounds = array<i64: 1, 128>}, {pipeline_mode = #tpu.pipeline_mode<synchronous>, transform_indices = @transform_5, window_bounds = array<i64: 128, 128>}, {pipeline_mode = #tpu.pipeline_mode<synchronous>, transform_indices = @transform_6, window_bounds = array<i64: 1, 128>}, {pipeline_mode = #tpu.pipeline_mode<synchronous>, transform_indices = @transform_7, window_bounds = array<i64: 1, 128>}, {pipeline_mode = #tpu.pipeline_mode<synchronous>, transform_indices = @transform_8, window_bounds = array<i64: 1, 128>}, {pipeline_mode = #tpu.pipeline_mode<synchronous>, transform_indices = @transform_9, window_bounds = array<i64: 128, 128>}, {pipeline_mode = #tpu.pipeline_mode<synchronous>, transform_indices = @transform_10, window_bounds = array<i64: 1, 128>}, {pipeline_mode = #tpu.pipeline_mode<synchronous>, transform_indices = @transform_11, window_bounds = array<i64: 1, 128>}, {pipeline_mode = #tpu.pipeline_mode<synchronous>, transform_indices = @transform_12, window_bounds = array<i64: 1, 128>}, {transform_indices = @transform_13, window_bounds = array<i64: 8, 128>}]} {
    %c0 = arith.constant 0 : index
    %c0_0 = arith.constant 0 : index
    %0 = vector.load %arg2[%c0, %c0_0] : memref<8x128xbf16, #tpu.memory_space<vmem>>, vector<8x128xbf16>
    %c0_1 = arith.constant 0 : index
    %c0_2 = arith.constant 0 : index
    %1 = vector.load %arg3[%c0_1, %c0_2] : memref<1x128xf32, #tpu.memory_space<vmem>>, vector<1x128xf32>
    %c0_3 = arith.constant 0 : index
    %c0_4 = arith.constant 0 : index
    %2 = vector.load %arg4[%c0_3, %c0_4] : memref<1x128xf32, #tpu.memory_space<vmem>>, vector<1x128xf32>
    %c0_5 = arith.constant 0 : index
    %c0_6 = arith.constant 0 : index
    %3 = vector.load %arg5[%c0_5, %c0_6] : memref<1x128xf32, #tpu.memory_space<vmem>>, vector<1x128xf32>
    %c0_7 = arith.constant 0 : index
    %c0_8 = arith.constant 0 : index
    %4 = vector.load %arg6[%c0_7, %c0_8] : memref<128x128xbf16, #tpu.memory_space<vmem>>, vector<128x128xbf16>
    %c0_9 = arith.constant 0 : index
    %c0_10 = arith.constant 0 : index
    %5 = vector.load %arg7[%c0_9, %c0_10] : memref<1x128xf32, #tpu.memory_space<vmem>>, vector<1x128xf32>
    %c0_11 = arith.constant 0 : index
    %c0_12 = arith.constant 0 : index
    %6 = vector.load %arg8[%c0_11, %c0_12] : memref<1x128xf32, #tpu.memory_space<vmem>>, vector<1x128xf32>
    %c0_13 = arith.constant 0 : index
    %c0_14 = arith.constant 0 : index
    %7 = vector.load %arg9[%c0_13, %c0_14] : memref<1x128xf32, #tpu.memory_space<vmem>>, vector<1x128xf32>
    %c0_15 = arith.constant 0 : index
    %c0_16 = arith.constant 0 : index
    %8 = vector.load %arg10[%c0_15, %c0_16] : memref<128x128xbf16, #tpu.memory_space<vmem>>, vector<128x128xbf16>
    %c0_17 = arith.constant 0 : index
    %c0_18 = arith.constant 0 : index
    %9 = vector.load %arg11[%c0_17, %c0_18] : memref<1x128xf32, #tpu.memory_space<vmem>>, vector<1x128xf32>
    %c0_19 = arith.constant 0 : index
    %c0_20 = arith.constant 0 : index
    %10 = vector.load %arg12[%c0_19, %c0_20] : memref<1x128xf32, #tpu.memory_space<vmem>>, vector<1x128xf32>
    %c0_21 = arith.constant 0 : index
    %c0_22 = arith.constant 0 : index
    %11 = vector.load %arg13[%c0_21, %c0_22] : memref<1x128xf32, #tpu.memory_space<vmem>>, vector<1x128xf32>
    %c0_23 = arith.constant 0 : index
    %c0_24 = arith.constant 0 : index
    %12 = vector.load %arg1[%c0_23, %c0_24] : memref<8x8xf32, #tpu.memory_space<vmem>>, vector<8x8xf32>
    %13 = arith.truncf %12 : vector<8x8xf32> to vector<8x8xbf16>
    %cst = arith.constant dense<0.000000e+00> : vector<8x128xf32>
    %14 = tpu.matmul %13, %0, %cst {dimension_numbers = #tpu.dot_dimension_numbers<[1], [0], [0], [1], [0, 0, 1, 1], [], []>} : vector<8x8xbf16>, vector<8x128xbf16>, vector<8x128xf32> -> vector<8x128xf32>
    %15 = vector.broadcast %1 : vector<1x128xf32> to vector<8x128xf32>
    %16 = arith.addf %14, %15 : vector<8x128xf32>
    %cst_25 = arith.constant dense<0.000000e+00> : vector<8xf32>
    %17 = vector.multi_reduction <add>, %16, %cst_25 [1] : vector<8x128xf32> to vector<8xf32>
    %18 = vector.shape_cast %17 : vector<8xf32> to vector<8x1xf32>
    %cst_26 = arith.constant 3.125000e-02 : f32
    %19 = vector.broadcast %cst_26 : f32 to vector<8x1xf32>
    %20 = arith.mulf %18, %19 : vector<8x1xf32>
    %21 = vector.broadcast %20 : vector<8x1xf32> to vector<8x128xf32>
    %22 = arith.subf %16, %21 : vector<8x128xf32>
    %23 = arith.mulf %22, %22 : vector<8x128xf32>
    %cst_27 = arith.constant dense<0.000000e+00> : vector<8xf32>
    %24 = vector.multi_reduction <add>, %23, %cst_27 [1] : vector<8x128xf32> to vector<8xf32>
    %25 = vector.shape_cast %24 : vector<8xf32> to vector<8x1xf32>
    %26 = arith.mulf %20, %20 : vector<8x1xf32>
    %cst_28 = arith.constant 9.600000e+01 : f32
    %27 = vector.broadcast %cst_28 : f32 to vector<8x1xf32>
    %28 = arith.mulf %27, %26 : vector<8x1xf32>
    %29 = arith.subf %25, %28 : vector<8x1xf32>
    %cst_29 = arith.constant 0.000000e+00 : f32
    %30 = vector.broadcast %cst_29 : f32 to vector<8x1xf32>
    %31 = arith.maximumf %29, %30 : vector<8x1xf32>
    %cst_30 = arith.constant 3.125000e-02 : f32
    %32 = vector.broadcast %cst_30 : f32 to vector<8x1xf32>
    %33 = arith.mulf %31, %32 : vector<8x1xf32>
    %cst_31 = arith.constant 9.99999974E-6 : f32
    %34 = vector.broadcast %cst_31 : f32 to vector<8x1xf32>
    %35 = arith.addf %33, %34 : vector<8x1xf32>
    %36 = math.rsqrt %35 : vector<8x1xf32>
    %37 = vector.broadcast %36 : vector<8x1xf32> to vector<8x128xf32>
    %38 = arith.mulf %22, %37 : vector<8x128xf32>
    %39 = vector.broadcast %2 : vector<1x128xf32> to vector<8x128xf32>
    %40 = arith.mulf %38, %39 : vector<8x128xf32>
    %41 = vector.broadcast %3 : vector<1x128xf32> to vector<8x128xf32>
    %42 = arith.addf %40, %41 : vector<8x128xf32>
    %cst_32 = arith.constant 0.000000e+00 : f32
    %43 = vector.broadcast %cst_32 : f32 to vector<8x128xf32>
    %44 = arith.maximumf %42, %43 : vector<8x128xf32>
    %45 = arith.truncf %44 : vector<8x128xf32> to vector<8x128xbf16>
    %cst_33 = arith.constant dense<0.000000e+00> : vector<8x128xf32>
    %46 = tpu.matmul %45, %4, %cst_33 {dimension_numbers = #tpu.dot_dimension_numbers<[1], [0], [0], [1], [0, 0, 1, 1], [], []>} : vector<8x128xbf16>, vector<128x128xbf16>, vector<8x128xf32> -> vector<8x128xf32>
    %47 = vector.broadcast %5 : vector<1x128xf32> to vector<8x128xf32>
    %48 = arith.addf %46, %47 : vector<8x128xf32>
    %cst_34 = arith.constant dense<0.000000e+00> : vector<8xf32>
    %49 = vector.multi_reduction <add>, %48, %cst_34 [1] : vector<8x128xf32> to vector<8xf32>
    %50 = vector.shape_cast %49 : vector<8xf32> to vector<8x1xf32>
    %cst_35 = arith.constant 3.125000e-02 : f32
    %51 = vector.broadcast %cst_35 : f32 to vector<8x1xf32>
    %52 = arith.mulf %50, %51 : vector<8x1xf32>
    %53 = vector.broadcast %52 : vector<8x1xf32> to vector<8x128xf32>
    %54 = arith.subf %48, %53 : vector<8x128xf32>
    %55 = arith.mulf %54, %54 : vector<8x128xf32>
    %cst_36 = arith.constant dense<0.000000e+00> : vector<8xf32>
    %56 = vector.multi_reduction <add>, %55, %cst_36 [1] : vector<8x128xf32> to vector<8xf32>
    %57 = vector.shape_cast %56 : vector<8xf32> to vector<8x1xf32>
    %58 = arith.mulf %52, %52 : vector<8x1xf32>
    %cst_37 = arith.constant 9.600000e+01 : f32
    %59 = vector.broadcast %cst_37 : f32 to vector<8x1xf32>
    %60 = arith.mulf %59, %58 : vector<8x1xf32>
    %61 = arith.subf %57, %60 : vector<8x1xf32>
    %cst_38 = arith.constant 0.000000e+00 : f32
    %62 = vector.broadcast %cst_38 : f32 to vector<8x1xf32>
    %63 = arith.maximumf %61, %62 : vector<8x1xf32>
    %cst_39 = arith.constant 3.125000e-02 : f32
    %64 = vector.broadcast %cst_39 : f32 to vector<8x1xf32>
    %65 = arith.mulf %63, %64 : vector<8x1xf32>
    %cst_40 = arith.constant 9.99999974E-6 : f32
    %66 = vector.broadcast %cst_40 : f32 to vector<8x1xf32>
    %67 = arith.addf %65, %66 : vector<8x1xf32>
    %68 = math.rsqrt %67 : vector<8x1xf32>
    %69 = vector.broadcast %68 : vector<8x1xf32> to vector<8x128xf32>
    %70 = arith.mulf %54, %69 : vector<8x128xf32>
    %71 = vector.broadcast %6 : vector<1x128xf32> to vector<8x128xf32>
    %72 = arith.mulf %70, %71 : vector<8x128xf32>
    %73 = vector.broadcast %7 : vector<1x128xf32> to vector<8x128xf32>
    %74 = arith.addf %72, %73 : vector<8x128xf32>
    %cst_41 = arith.constant 0.000000e+00 : f32
    %75 = vector.broadcast %cst_41 : f32 to vector<8x128xf32>
    %76 = arith.maximumf %74, %75 : vector<8x128xf32>
    %77 = arith.truncf %76 : vector<8x128xf32> to vector<8x128xbf16>
    %cst_42 = arith.constant dense<0.000000e+00> : vector<8x128xf32>
    %78 = tpu.matmul %77, %8, %cst_42 {dimension_numbers = #tpu.dot_dimension_numbers<[1], [0], [0], [1], [0, 0, 1, 1], [], []>} : vector<8x128xbf16>, vector<128x128xbf16>, vector<8x128xf32> -> vector<8x128xf32>
    %79 = vector.broadcast %9 : vector<1x128xf32> to vector<8x128xf32>
    %80 = arith.addf %78, %79 : vector<8x128xf32>
    %cst_43 = arith.constant dense<0.000000e+00> : vector<8xf32>
    %81 = vector.multi_reduction <add>, %80, %cst_43 [1] : vector<8x128xf32> to vector<8xf32>
    %82 = vector.shape_cast %81 : vector<8xf32> to vector<8x1xf32>
    %cst_44 = arith.constant 3.125000e-02 : f32
    %83 = vector.broadcast %cst_44 : f32 to vector<8x1xf32>
    %84 = arith.mulf %82, %83 : vector<8x1xf32>
    %85 = vector.broadcast %84 : vector<8x1xf32> to vector<8x128xf32>
    %86 = arith.subf %80, %85 : vector<8x128xf32>
    %87 = arith.mulf %86, %86 : vector<8x128xf32>
    %cst_45 = arith.constant dense<0.000000e+00> : vector<8xf32>
    %88 = vector.multi_reduction <add>, %87, %cst_45 [1] : vector<8x128xf32> to vector<8xf32>
    %89 = vector.shape_cast %88 : vector<8xf32> to vector<8x1xf32>
    %90 = arith.mulf %84, %84 : vector<8x1xf32>
    %cst_46 = arith.constant 9.600000e+01 : f32
    %91 = vector.broadcast %cst_46 : f32 to vector<8x1xf32>
    %92 = arith.mulf %91, %90 : vector<8x1xf32>
    %93 = arith.subf %89, %92 : vector<8x1xf32>
    %cst_47 = arith.constant 0.000000e+00 : f32
    %94 = vector.broadcast %cst_47 : f32 to vector<8x1xf32>
    %95 = arith.maximumf %93, %94 : vector<8x1xf32>
    %cst_48 = arith.constant 3.125000e-02 : f32
    %96 = vector.broadcast %cst_48 : f32 to vector<8x1xf32>
    %97 = arith.mulf %95, %96 : vector<8x1xf32>
    %cst_49 = arith.constant 9.99999974E-6 : f32
    %98 = vector.broadcast %cst_49 : f32 to vector<8x1xf32>
    %99 = arith.addf %97, %98 : vector<8x1xf32>
    %100 = math.rsqrt %99 : vector<8x1xf32>
    %101 = vector.broadcast %100 : vector<8x1xf32> to vector<8x128xf32>
    %102 = arith.mulf %86, %101 : vector<8x128xf32>
    %103 = vector.broadcast %10 : vector<1x128xf32> to vector<8x128xf32>
    %104 = arith.mulf %102, %103 : vector<8x128xf32>
    %105 = vector.broadcast %11 : vector<1x128xf32> to vector<8x128xf32>
    %106 = arith.addf %104, %105 : vector<8x128xf32>
    %c0_50 = arith.constant 0 : index
    %c0_51 = arith.constant 0 : index
    %107 = vector.load %arg14[%c0_50, %c0_51] : memref<8x128xf32, #tpu.memory_space<vmem>>, vector<8x128xf32>
    tpu.vector_store %arg14[%c0_50, %c0_51], %106 {strides = array<i32>} : memref<8x128xf32, #tpu.memory_space<vmem>>, vector<8x128xf32>,
    return
  }
  func.func @transform_0(%arg0: i32) -> (i32, i32) {
    %c0_i32 = arith.constant 0 : i32
    %c0_i32_0 = arith.constant 0 : i32
    return %arg0, %c0_i32 : i32, i32
  }
  func.func @transform_1(%arg0: i32) -> (i32, i32) {
    %c0_i32 = arith.constant 0 : i32
    %c0_i32_0 = arith.constant 0 : i32
    %c0_i32_1 = arith.constant 0 : i32
    return %c0_i32, %c0_i32_0 : i32, i32
  }
  func.func @transform_2(%arg0: i32) -> (i32, i32) {
    %c0_i32 = arith.constant 0 : i32
    %c0_i32_0 = arith.constant 0 : i32
    %c0_i32_1 = arith.constant 0 : i32
    return %c0_i32, %c0_i32_0 : i32, i32
  }
  func.func @transform_3(%arg0: i32) -> (i32, i32) {
    %c0_i32 = arith.constant 0 : i32
    %c0_i32_0 = arith.constant 0 : i32
    %c0_i32_1 = arith.constant 0 : i32
    return %c0_i32, %c0_i32_0 : i32, i32
  }
  func.func @transform_4(%arg0: i32) -> (i32, i32) {
    %c0_i32 = arith.constant 0 : i32
    %c0_i32_0 = arith.constant 0 : i32
    %c0_i32_1 = arith.constant 0 : i32
    return %c0_i32, %c0_i32_0 : i32, i32
  }
  func.func @transform_5(%arg0: i32) -> (i32, i32) {
    %c0_i32 = arith.constant 0 : i32
    %c0_i32_0 = arith.constant 0 : i32
    %c0_i32_1 = arith.constant 0 : i32
    return %c0_i32, %c0_i32_0 : i32, i32
  }
  func.func @transform_6(%arg0: i32) -> (i32, i32) {
    %c0_i32 = arith.constant 0 : i32
    %c0_i32_0 = arith.constant 0 : i32
    %c0_i32_1 = arith.constant 0 : i32
    return %c0_i32, %c0_i32_0 : i32, i32
  }
  func.func @transform_7(%arg0: i32) -> (i32, i32) {
    %c0_i32 = arith.constant 0 : i32
    %c0_i32_0 = arith.constant 0 : i32
    %c0_i32_1 = arith.constant 0 : i32
    return %c0_i32, %c0_i32_0 : i32, i32
  }
  func.func @transform_8(%arg0: i32) -> (i32, i32) {
    %c0_i32 = arith.constant 0 : i32
    %c0_i32_0 = arith.constant 0 : i32
    %c0_i32_1 = arith.constant 0 : i32
    return %c0_i32, %c0_i32_0 : i32, i32
  }
  func.func @transform_9(%arg0: i32) -> (i32, i32) {
    %c0_i32 = arith.constant 0 : i32
    %c0_i32_0 = arith.constant 0 : i32
    %c0_i32_1 = arith.constant 0 : i32
    return %c0_i32, %c0_i32_0 : i32, i32
  }
  func.func @transform_10(%arg0: i32) -> (i32, i32) {
    %c0_i32 = arith.constant 0 : i32
    %c0_i32_0 = arith.constant 0 : i32
    %c0_i32_1 = arith.constant 0 : i32
    return %c0_i32, %c0_i32_0 : i32, i32
  }
  func.func @transform_11(%arg0: i32) -> (i32, i32) {
    %c0_i32 = arith.constant 0 : i32
    %c0_i32_0 = arith.constant 0 : i32
    %c0_i32_1 = arith.constant 0 : i32
    return %c0_i32, %c0_i32_0 : i32, i32
  }
  func.func @transform_12(%arg0: i32) -> (i32, i32) {
    %c0_i32 = arith.constant 0 : i32
    %c0_i32_0 = arith.constant 0 : i32
    %c0_i32_1 = arith.constant 0 : i32
    return %c0_i32, %c0_i32_0 : i32, i32
  }
  func.func @transform_13(%arg0: i32) -> (i32, i32) {
    %c0_i32 = arith.constant 0 : i32
    %c0_i32_0 = arith.constant 0 : i32
    return %arg0, %c0_i32 : i32, i32
  }
}

</mosaic_0001>

<llo_original>
// kernel: tpu_custom_call.1
$region0: #{tpu_custom_call.1}
  #allocation0 [shape = 'u32[]', space=smem, size = 0x4, offset = 0x4, fixed_abs, tag = 'smem constant byte address 0x4 - core index']
  #allocation1 [shape = 'u32[144,128]{1,0:T(1,128)}', space=vmem, size = 0x12000, scoped, tag = 'internal scratch']
  %s0 = inlined_call_operand.vmem [shape: f32[16,8], index: 0, kind: input, shape index: {}]
  %s1 = inlined_call_operand.vmem [shape: bf16[8,128], index: 1, kind: input, shape index: {}]
  %s2 = inlined_call_operand.vmem [shape: f32[1,128], index: 2, kind: input, shape index: {}]
  %s3 = inlined_call_operand.vmem [shape: f32[1,128], index: 3, kind: input, shape index: {}]
  %s4 = inlined_call_operand.vmem [shape: f32[1,128], index: 4, kind: input, shape index: {}]
  %s5 = inlined_call_operand.hbm [shape: bf16[128,128], index: 5, kind: input, shape index: {}]
  %s6 = inlined_call_operand.vmem [shape: f32[1,128], index: 6, kind: input, shape index: {}]
  %s7 = inlined_call_operand.vmem [shape: f32[1,128], index: 7, kind: input, shape index: {}]
  %s8 = inlined_call_operand.vmem [shape: f32[1,128], index: 8, kind: input, shape index: {}]
  %s9 = inlined_call_operand.hbm [shape: bf16[128,128], index: 9, kind: input, shape index: {}]
  %s10 = inlined_call_operand.vmem [shape: f32[1,128], index: 10, kind: input, shape index: {}]
  %s11 = inlined_call_operand.vmem [shape: f32[1,128], index: 11, kind: input, shape index: {}]
  %s12 = inlined_call_operand.vmem [shape: f32[1,128], index: 12, kind: input, shape index: {}]
  %s13 = inlined_call_operand.hbm [shape: f32[16,128], index: 13, kind: output, shape index: {}]
  %s14 = sld [smem:[#allocation0]]
  $region93: #{tpu_custom_call.1} parent=0
    _
  %s16 = ssub.s32 1, %s14
  %s17 = scalar_select 0, %s16, %s14
  $region1: #{tpu_custom_call.1} parent=0
    #allocation2 [shape = 'u8[32768]{0}', space=vmem, size = 0x8000, scoped, tag = 'input window, operand 5, single buffered']
    #allocation3 [shape = 's32[2]{0}', space=sflag, size = 0x8, scoped, tag = 'scoped memory for tpu_custom_call.1']
    #allocation4 [shape = 's32[2]{0}', space=sflag, size = 0x8, scoped, tag = 'scoped memory for tpu_custom_call.1']
    #allocation5 [shape = 'u8[32768]{0}', space=vmem, size = 0x8000, scoped, tag = 'input window, operand 9, single buffered']
    #allocation6 [shape = 's32[1]{0}', space=sflag, size = 0x4, scoped, tag = 'scoped memory for tpu_custom_call.1']
    #allocation7 [shape = 'u8[8192]{0}', space=vmem, size = 0x2000, scoped, tag = 'output window, operand 0']
    %18 = vsyncpa [#allocation3], 0
    %19 = vsyncpa [#allocation6], 0
    %20 = vsyncpa [#allocation4], 0
    %s21 = scalar_lea.sflag [#allocation4], 1
    %22 = vsyncpa %s21, 0
    loop: start=0, step=1, limit=4
    $region2: #{tpu_custom_call.1} parent=1 // loop_pre_header
      _
    $region3: #{tpu_custom_call.1} parent=1 // loop_header
      %s24 = sphi 0, %s28
      %p25 = scmp.ge.s32.totalorder %s24, 4
      %s34 = sphi 0, %s36
      %s37 = sphi 0, %s34
      %s38 = sphi 0, %s37
      %s54 = sphi 0, %s38
      %s58 = sphi 0, %s58
      %s60 = sphi 0, %s58
      %s61 = sphi 0, %s60
      %s75 = sphi 0, %s61
      %s79 = sphi 0, %s79
      %s81 = sphi 0, %s79
      %s82 = sphi 0, %s81
      %s96 = sphi 0, %s82
      %s100 = sphi 0, %s100
      %s102 = sphi 0, %s100
      %s103 = sphi 0, %s102
      %s117 = sphi 0, %s103
      %s121 = sphi 0, %s121
      %s123 = sphi 0, %s121
      %s124 = sphi 0, %s123
      %s138 = sphi 0, %s124
      %s142 = sphi 0, %s142
      %s144 = sphi 0, %s142
      %s145 = sphi 0, %s144
      %s159 = sphi 0, %s145
      %s163 = sphi 0, %s163
      %s165 = sphi 0, %s163
      %s166 = sphi 0, %s165
      %s180 = sphi 0, %s166
      %s184 = sphi 0, %s184
      %s186 = sphi 0, %s184
      %s187 = sphi 0, %s186
      %s201 = sphi 0, %s187
      %s205 = sphi 0, %s205
      %s207 = sphi 0, %s205
      %s208 = sphi 0, %s207
      %s222 = sphi 0, %s208
      %s226 = sphi 0, %s226
      %s228 = sphi 0, %s226
      %s229 = sphi 0, %s228
      %s243 = sphi 0, %s229
      %s247 = sphi 0, %s247
      %s249 = sphi 0, %s247
      %s250 = sphi 0, %s249
      %s264 = sphi 0, %s250
      %s268 = sphi 0, %s268
      %s270 = sphi 0, %s268
      %s271 = sphi 0, %s270
      %s285 = sphi 0, %s271
      %s289 = sphi 0, %s289
      %s291 = sphi 0, %s289
      %s292 = sphi 0, %s291
      %s306 = sphi 0, %s292
      %s312 = sphi 0, %s314
      %s315 = sphi 0, %s312
      %s316 = sphi 0, %s315
      %s332 = sphi 0, %s316
    $region4: #{tpu_custom_call.1} parent=1 // loop_header_branch
      %27 = sbr.rel (%p25) target = $region8
    $region5: #{tpu_custom_call.1} parent=1 // loop_body
      %s29 = ssub.s32 %s24, 1
      %s30 = ssub.s32 %s24, 2
      %s31 = sadd.s32 %s24, 1
      %s32 = ssub.s32 %s24, %s31
      %p33 = scmp.eq.s32.totalorder %s32, 0
      %s35 = sadd.s32 %s34, 1
      %s36 = scalar_select %p33, %s34, %s35
      %p39 = pneg %p33
      %p40 = scmp.eq.s32.totalorder %s24, 1
      %p41 = por %p39, %p40
      %p42 = scmp.ne.s32.totalorder %s34, %s37
      %p43 = scmp.eq.s32.totalorder %s24, 0
      %p44 = por %p42, %p43
      %p45 = scmp.ne.s32.totalorder %s34, %s37
      %p46 = scmp.eq.s32.totalorder %s29, 1
      %p47 = por %p45, %p46
      %p48 = scmp.ne.s32.totalorder %s37, %s38
      %p49 = scmp.eq.s32.totalorder %s29, 0
      %p50 = por %p48, %p49
      %p51 = scmp.ne.s32.totalorder %s37, %s38
      %p52 = scmp.eq.s32.totalorder %s30, 1
      %p53 = por %p51, %p52
      %p55 = scmp.ne.s32.totalorder %s38, %s54
      %p56 = scmp.eq.s32.totalorder %s30, 0
      %p57 = por %p55, %p56
      %s59 = sadd.s32 %s58, 1
      %p62 = scmp.eq.s32.totalorder %s24, 1
      %p63 = scmp.ne.s32.totalorder %s58, %s60
      %p64 = scmp.eq.s32.totalorder %s24, 0
      %p65 = por %p63, %p64
      %p66 = scmp.ne.s32.totalorder %s58, %s60
      %p67 = scmp.eq.s32.totalorder %s29, 1
      %p68 = por %p66, %p67
      %p69 = scmp.ne.s32.totalorder %s60, %s61
      %p70 = scmp.eq.s32.totalorder %s29, 0
      %p71 = por %p69, %p70
      %p72 = scmp.ne.s32.totalorder %s60, %s61
      %p73 = scmp.eq.s32.totalorder %s30, 1
      %p74 = por %p72, %p73
      %p76 = scmp.ne.s32.totalorder %s61, %s75
      %p77 = scmp.eq.s32.totalorder %s30, 0
      %p78 = por %p76, %p77
      %s80 = sadd.s32 %s79, 1
      %p83 = scmp.eq.s32.totalorder %s24, 1
      %p84 = scmp.ne.s32.totalorder %s79, %s81
      %p85 = scmp.eq.s32.totalorder %s24, 0
      %p86 = por %p84, %p85
      %p87 = scmp.ne.s32.totalorder %s79, %s81
      %p88 = scmp.eq.s32.totalorder %s29, 1
      %p89 = por %p87, %p88
      %p90 = scmp.ne.s32.totalorder %s81, %s82
      %p91 = scmp.eq.s32.totalorder %s29, 0
      %p92 = por %p90, %p91
      %p93 = scmp.ne.s32.totalorder %s81, %s82
      %p94 = scmp.eq.s32.totalorder %s30, 1
      %p95 = por %p93, %p94
      %p97 = scmp.ne.s32.totalorder %s82, %s96
      %p98 = scmp.eq.s32.totalorder %s30, 0
      %p99 = por %p97, %p98
      %s101 = sadd.s32 %s100, 1
      %p104 = scmp.eq.s32.totalorder %s24, 1
      %p105 = scmp.ne.s32.totalorder %s100, %s102
      %p106 = scmp.eq.s32.totalorder %s24, 0
      %p107 = por %p105, %p106
      %p108 = scmp.ne.s32.totalorder %s100, %s102
      %p109 = scmp.eq.s32.totalorder %s29, 1
      %p110 = por %p108, %p109
      %p111 = scmp.ne.s32.totalorder %s102, %s103
      %p112 = scmp.eq.s32.totalorder %s29, 0
      %p113 = por %p111, %p112
      %p114 = scmp.ne.s32.totalorder %s102, %s103
      %p115 = scmp.eq.s32.totalorder %s30, 1
      %p116 = por %p114, %p115
      %p118 = scmp.ne.s32.totalorder %s103, %s117
      %p119 = scmp.eq.s32.totalorder %s30, 0
      %p120 = por %p118, %p119
      %s122 = sadd.s32 %s121, 1
      %p125 = scmp.eq.s32.totalorder %s24, 1
      %p126 = scmp.ne.s32.totalorder %s121, %s123
      %p127 = scmp.eq.s32.totalorder %s24, 0
      %p128 = por %p126, %p127
      %p129 = scmp.ne.s32.totalorder %s121, %s123
      %p130 = scmp.eq.s32.totalorder %s29, 1
      %p131 = por %p129, %p130
      %p132 = scmp.ne.s32.totalorder %s123, %s124
      %p133 = scmp.eq.s32.totalorder %s29, 0
      %p134 = por %p132, %p133
      %p135 = scmp.ne.s32.totalorder %s123, %s124
      %p136 = scmp.eq.s32.totalorder %s30, 1
      %p137 = por %p135, %p136
      %p139 = scmp.ne.s32.totalorder %s124, %s138
      %p140 = scmp.eq.s32.totalorder %s30, 0
      %p141 = por %p139, %p140
      %s143 = sadd.s32 %s142, 1
      %p146 = scmp.eq.s32.totalorder %s24, 1
      %p147 = scmp.ne.s32.totalorder %s142, %s144
      %p148 = scmp.eq.s32.totalorder %s24, 0
      %p149 = por %p147, %p148
      %p150 = scmp.ne.s32.totalorder %s142, %s144
      %p151 = scmp.eq.s32.totalorder %s29, 1
      %p152 = por %p150, %p151
      %p153 = scmp.ne.s32.totalorder %s144, %s145
      %p154 = scmp.eq.s32.totalorder %s29, 0
      %p155 = por %p153, %p154
      %p156 = scmp.ne.s32.totalorder %s144, %s145
      %p157 = scmp.eq.s32.totalorder %s30, 1
      %p158 = por %p156, %p157
      %p160 = scmp.ne.s32.totalorder %s145, %s159
      %p161 = scmp.eq.s32.totalorder %s30, 0
      %p162 = por %p160, %p161
      %s164 = sadd.s32 %s163, 1
      %p167 = scmp.eq.s32.totalorder %s24, 1
      %p168 = scmp.ne.s32.totalorder %s163, %s165
      %p169 = scmp.eq.s32.totalorder %s24, 0
      %p170 = por %p168, %p169
      %p171 = scmp.ne.s32.totalorder %s163, %s165
      %p172 = scmp.eq.s32.totalorder %s29, 1
      %p173 = por %p171, %p172
      %p174 = scmp.ne.s32.totalorder %s165, %s166
      %p175 = scmp.eq.s32.totalorder %s29, 0
      %p176 = por %p174, %p175
      %p177 = scmp.ne.s32.totalorder %s165, %s166
      %p178 = scmp.eq.s32.totalorder %s30, 1
      %p179 = por %p177, %p178
      %p181 = scmp.ne.s32.totalorder %s166, %s180
      %p182 = scmp.eq.s32.totalorder %s30, 0
      %p183 = por %p181, %p182
      %s185 = sadd.s32 %s184, 1
      %p188 = scmp.eq.s32.totalorder %s24, 1
      %p189 = scmp.ne.s32.totalorder %s184, %s186
      %p190 = scmp.eq.s32.totalorder %s24, 0
      %p191 = por %p189, %p190
      %p192 = scmp.ne.s32.totalorder %s184, %s186
      %p193 = scmp.eq.s32.totalorder %s29, 1
      %p194 = por %p192, %p193
      %p195 = scmp.ne.s32.totalorder %s186, %s187
      %p196 = scmp.eq.s32.totalorder %s29, 0
      %p197 = por %p195, %p196
      %p198 = scmp.ne.s32.totalorder %s186, %s187
      %p199 = scmp.eq.s32.totalorder %s30, 1
      %p200 = por %p198, %p199
      %p202 = scmp.ne.s32.totalorder %s187, %s201
      %p203 = scmp.eq.s32.totalorder %s30, 0
      %p204 = por %p202, %p203
      %s206 = sadd.s32 %s205, 1
      %p209 = scmp.eq.s32.totalorder %s24, 1
      %p210 = scmp.ne.s32.totalorder %s205, %s207
      %p211 = scmp.eq.s32.totalorder %s24, 0
      %p212 = por %p210, %p211
      %p213 = scmp.ne.s32.totalorder %s205, %s207
      %p214 = scmp.eq.s32.totalorder %s29, 1
      %p215 = por %p213, %p214
      %p216 = scmp.ne.s32.totalorder %s207, %s208
      %p217 = scmp.eq.s32.totalorder %s29, 0
      %p218 = por %p216, %p217
      %p219 = scmp.ne.s32.totalorder %s207, %s208
      %p220 = scmp.eq.s32.totalorder %s30, 1
      %p221 = por %p219, %p220
      %p223 = scmp.ne.s32.totalorder %s208, %s222
      %p224 = scmp.eq.s32.totalorder %s30, 0
      %p225 = por %p223, %p224
      %s227 = sadd.s32 %s226, 1
      %p230 = scmp.eq.s32.totalorder %s24, 1
      %p231 = scmp.ne.s32.totalorder %s226, %s228
      %p232 = scmp.eq.s32.totalorder %s24, 0
      %p233 = por %p231, %p232
      %p234 = scmp.ne.s32.totalorder %s226, %s228
      %p235 = scmp.eq.s32.totalorder %s29, 1
      %p236 = por %p234, %p235
      %p237 = scmp.ne.s32.totalorder %s228, %s229
      %p238 = scmp.eq.s32.totalorder %s29, 0
      %p239 = por %p237, %p238
      %p240 = scmp.ne.s32.totalorder %s228, %s229
      %p241 = scmp.eq.s32.totalorder %s30, 1
      %p242 = por %p240, %p241
      %p244 = scmp.ne.s32.totalorder %s229, %s243
      %p245 = scmp.eq.s32.totalorder %s30, 0
      %p246 = por %p244, %p245
      %s248 = sadd.s32 %s247, 1
      %p251 = scmp.eq.s32.totalorder %s24, 1
      %p252 = scmp.ne.s32.totalorder %s247, %s249
      %p253 = scmp.eq.s32.totalorder %s24, 0
      %p254 = por %p252, %p253
      %p255 = scmp.ne.s32.totalorder %s247, %s249
      %p256 = scmp.eq.s32.totalorder %s29, 1
      %p257 = por %p255, %p256
      %p258 = scmp.ne.s32.totalorder %s249, %s250
      %p259 = scmp.eq.s32.totalorder %s29, 0
      %p260 = por %p258, %p259
      %p261 = scmp.ne.s32.totalorder %s249, %s250
      %p262 = scmp.eq.s32.totalorder %s30, 1
      %p263 = por %p261, %p262
      %p265 = scmp.ne.s32.totalorder %s250, %s264
      %p266 = scmp.eq.s32.totalorder %s30, 0
      %p267 = por %p265, %p266
      %s269 = sadd.s32 %s268, 1
      %p272 = scmp.eq.s32.totalorder %s24, 1
      %p273 = scmp.ne.s32.totalorder %s268, %s270
      %p274 = scmp.eq.s32.totalorder %s24, 0
      %p275 = por %p273, %p274
      %p276 = scmp.ne.s32.totalorder %s268, %s270
      %p277 = scmp.eq.s32.totalorder %s29, 1
      %p278 = por %p276, %p277
      %p279 = scmp.ne.s32.totalorder %s270, %s271
      %p280 = scmp.eq.s32.totalorder %s29, 0
      %p281 = por %p279, %p280
      %p282 = scmp.ne.s32.totalorder %s270, %s271
      %p283 = scmp.eq.s32.totalorder %s30, 1
      %p284 = por %p282, %p283
      %p286 = scmp.ne.s32.totalorder %s271, %s285
      %p287 = scmp.eq.s32.totalorder %s30, 0
      %p288 = por %p286, %p287
      %s290 = sadd.s32 %s289, 1
      %p293 = scmp.eq.s32.totalorder %s24, 1
      %p294 = scmp.ne.s32.totalorder %s289, %s291
      %p295 = scmp.eq.s32.totalorder %s24, 0
      %p296 = por %p294, %p295
      %p297 = scmp.ne.s32.totalorder %s289, %s291
      %p298 = scmp.eq.s32.totalorder %s29, 1
      %p299 = por %p297, %p298
      %p300 = scmp.ne.s32.totalorder %s291, %s292
      %p301 = scmp.eq.s32.totalorder %s29, 0
      %p302 = por %p300, %p301
      %p303 = scmp.ne.s32.totalorder %s291, %s292
      %p304 = scmp.eq.s32.totalorder %s30, 1
      %p305 = por %p303, %p304
      %p307 = scmp.ne.s32.totalorder %s292, %s306
      %p308 = scmp.eq.s32.totalorder %s30, 0
      %p309 = por %p307, %p308
      %s310 = ssub.s32 %s24, %s31
      %p311 = scmp.eq.s32.totalorder %s310, 0
      %s313 = sadd.s32 %s312, 1
      %s314 = scalar_select %p311, %s312, %s313
      %p317 = pneg %p311
      %p318 = scmp.eq.s32.totalorder %s24, 1
      %p319 = por %p317, %p318
      %p320 = scmp.ne.s32.totalorder %s312, %s315
      %p321 = scmp.eq.s32.totalorder %s24, 0
      %p322 = por %p320, %p321
      %p323 = scmp.ne.s32.totalorder %s312, %s315
      %p324 = scmp.eq.s32.totalorder %s29, 1
      %p325 = por %p323, %p324
      %p326 = scmp.ne.s32.totalorder %s315, %s316
      %p327 = scmp.eq.s32.totalorder %s29, 0
      %p328 = por %p326, %p327
      %p329 = scmp.ne.s32.totalorder %s315, %s316
      %p330 = scmp.eq.s32.totalorder %s30, 1
      %p331 = por %p329, %p330
      %p333 = scmp.ne.s32.totalorder %s316, %s332
      %p334 = scmp.eq.s32.totalorder %s30, 0
      %p335 = por %p333, %p334
      %p336 = scmp.le.s32.totalorder 1, %s24
      %p337 = scmp.lt.s32.totalorder %s24, 3
      %p338 = pnand %p336, %p337
      %p339 = pneg %p338
      // Predicated region
      $region9: #{tpu_custom_call.1} parent=5 // pred_check
        _
      $region10: #{tpu_custom_call.1} parent=5 // pred_check_branch
        %341 = sbr.rel (%p338) target = $region12
      $region11: #{tpu_custom_call.1} parent=5 // pred_region
        %s342 = ssub.s32 %s24, 1
        // Predicated region
        $region13: #{tpu_custom_call.1} parent=11 // pred_check
          %p343 = pneg %p71
        $region14: #{tpu_custom_call.1} parent=11 // pred_check_branch
          %345 = sbr.rel (%p343) target = $region16
        $region15: #{tpu_custom_call.1} parent=11 // pred_region
          _
        $region16: #{tpu_custom_call.1} parent=11 // pred_fallthru
          _
        // Predicated region
        $region17: #{tpu_custom_call.1} parent=11 // pred_check
          %p346 = pneg %p92
        $region18: #{tpu_custom_call.1} parent=11 // pred_check_branch
          %348 = sbr.rel (%p346) target = $region20
        $region19: #{tpu_custom_call.1} parent=11 // pred_region
          _
        $region20: #{tpu_custom_call.1} parent=11 // pred_fallthru
          _
        // Predicated region
        $region21: #{tpu_custom_call.1} parent=11 // pred_check
          %p349 = pneg %p113
        $region22: #{tpu_custom_call.1} parent=11 // pred_check_branch
          %351 = sbr.rel (%p349) target = $region24
        $region23: #{tpu_custom_call.1} parent=11 // pred_region
          _
        $region24: #{tpu_custom_call.1} parent=11 // pred_fallthru
          _
        // Predicated region
        $region25: #{tpu_custom_call.1} parent=11 // pred_check
          %p352 = pneg %p134
        $region26: #{tpu_custom_call.1} parent=11 // pred_check_branch
          %354 = sbr.rel (%p352) target = $region28
        $region27: #{tpu_custom_call.1} parent=11 // pred_region
          _
        $region28: #{tpu_custom_call.1} parent=11 // pred_fallthru
          _
        // Predicated region
        $region29: #{tpu_custom_call.1} parent=11 // pred_check
          %p355 = pneg %p155
        $region30: #{tpu_custom_call.1} parent=11 // pred_check_branch
          %357 = sbr.rel (%p355) target = $region32
        $region31: #{tpu_custom_call.1} parent=11 // pred_region
          %s359 = ssub.s32 1024, 1024
          %360 = vsyncadd [#allocation3], %s359
          %s361 = sshll.u32 [#allocation2], 4
          %s362 = int_to_ptr.vmem [resolvable:$true] %s361
          %367 = dma.hbm_to_vmem [thread:$0]  %s5, 1024, %s362, [#allocation3], 64, 64, 4
        $region32: #{tpu_custom_call.1} parent=11 // pred_fallthru
          _
        // Predicated region
        $region33: #{tpu_custom_call.1} parent=11 // pred_check
          %p368 = pneg %p176
        $region34: #{tpu_custom_call.1} parent=11 // pred_check_branch
          %370 = sbr.rel (%p368) target = $region36
        $region35: #{tpu_custom_call.1} parent=11 // pred_region
          _
        $region36: #{tpu_custom_call.1} parent=11 // pred_fallthru
          _
        // Predicated region
        $region37: #{tpu_custom_call.1} parent=11 // pred_check
          %p371 = pneg %p197
        $region38: #{tpu_custom_call.1} parent=11 // pred_check_branch
          %373 = sbr.rel (%p371) target = $region40
        $region39: #{tpu_custom_call.1} parent=11 // pred_region
          _
        $region40: #{tpu_custom_call.1} parent=11 // pred_fallthru
          _
        // Predicated region
        $region41: #{tpu_custom_call.1} parent=11 // pred_check
          %p374 = pneg %p218
        $region42: #{tpu_custom_call.1} parent=11 // pred_check_branch
          %376 = sbr.rel (%p374) target = $region44
        $region43: #{tpu_custom_call.1} parent=11 // pred_region
          _
        $region44: #{tpu_custom_call.1} parent=11 // pred_fallthru
          _
        // Predicated region
        $region45: #{tpu_custom_call.1} parent=11 // pred_check
          %p377 = pneg %p239
        $region46: #{tpu_custom_call.1} parent=11 // pred_check_branch
          %379 = sbr.rel (%p377) target = $region48
        $region47: #{tpu_custom_call.1} parent=11 // pred_region
          %s381 = ssub.s32 1024, 1024
          %382 = vsyncadd [#allocation6], %s381
          %s383 = sshll.u32 [#allocation5], 4
          %s384 = int_to_ptr.vmem [resolvable:$true] %s383
          %389 = dma.hbm_to_vmem [thread:$0]  %s9, 1024, %s384, [#allocation6], 64, 64, 4
        $region48: #{tpu_custom_call.1} parent=11 // pred_fallthru
          _
        // Predicated region
        $region49: #{tpu_custom_call.1} parent=11 // pred_check
          %p390 = pneg %p260
        $region50: #{tpu_custom_call.1} parent=11 // pred_check_branch
          %392 = sbr.rel (%p390) target = $region52
        $region51: #{tpu_custom_call.1} parent=11 // pred_region
          _
        $region52: #{tpu_custom_call.1} parent=11 // pred_fallthru
          _
        // Predicated region
        $region53: #{tpu_custom_call.1} parent=11 // pred_check
          %p393 = pneg %p281
        $region54: #{tpu_custom_call.1} parent=11 // pred_check_branch
          %395 = sbr.rel (%p393) target = $region56
        $region55: #{tpu_custom_call.1} parent=11 // pred_region
          _
        $region56: #{tpu_custom_call.1} parent=11 // pred_fallthru
          _
        // Predicated region
        $region57: #{tpu_custom_call.1} parent=11 // pred_check
          %p396 = pneg %p302
        $region58: #{tpu_custom_call.1} parent=11 // pred_check_branch
          %398 = sbr.rel (%p396) target = $region60
        $region59: #{tpu_custom_call.1} parent=11 // pred_region
          _
        $region60: #{tpu_custom_call.1} parent=11 // pred_fallthru
          _
      $region12: #{tpu_custom_call.1} parent=5 // pred_fallthru
        _
      %p399 = scmp.lt.s32.totalorder %s24, 2
      // Predicated region
      $region61: #{tpu_custom_call.1} parent=5 // pred_check
        %p400 = pneg %p399
      $region62: #{tpu_custom_call.1} parent=5 // pred_check_branch
        %402 = sbr.rel (%p400) target = $region64
      $region63: #{tpu_custom_call.1} parent=5 // pred_region
        // Predicated region
        $region65: #{tpu_custom_call.1} parent=63 // pred_check
          %p403 = pneg %p44
        $region66: #{tpu_custom_call.1} parent=63 // pred_check_branch
          %405 = sbr.rel (%p403) target = $region68
        $region67: #{tpu_custom_call.1} parent=63 // pred_region
          %p406 = scmp.lt.s32.totalorder %s24, 1
          %s407 = scalar_select %p406, %s24, 1
          %s408 = smul.addr %s407, 8
          %s409 = scalar_lea.vmem %s0, %s408
        $region68: #{tpu_custom_call.1} parent=63 // pred_fallthru
          _
      $region64: #{tpu_custom_call.1} parent=5 // pred_fallthru
        _
      %p410 = scmp.le.s32.totalorder 1, %s24
      %p411 = scmp.lt.s32.totalorder %s24, 3
      %p412 = pnand %p410, %p411
      %p413 = pneg %p412
      // Predicated region
      $region69: #{tpu_custom_call.1} parent=5 // pred_check
        _
      $region70: #{tpu_custom_call.1} parent=5 // pred_check_branch
        %415 = sbr.rel (%p412) target = $region72
      $region71: #{tpu_custom_call.1} parent=5 // pred_region
        %s416 = ssub.s32 %s24, 1
        // Predicated region
        $region73: #{tpu_custom_call.1} parent=71 // pred_check
          %p417 = pneg %p155
        $region74: #{tpu_custom_call.1} parent=71 // pred_check_branch
          %419 = sbr.rel (%p417) target = $region76
        $region75: #{tpu_custom_call.1} parent=71 // pred_region
          %420 = dma.done [#allocation3], 1024
        $region76: #{tpu_custom_call.1} parent=71 // pred_fallthru
          _
        // Predicated region
        $region77: #{tpu_custom_call.1} parent=71 // pred_check
          %p421 = pneg %p239
        $region78: #{tpu_custom_call.1} parent=71 // pred_check_branch
          %423 = sbr.rel (%p421) target = $region80
        $region79: #{tpu_custom_call.1} parent=71 // pred_region
          %424 = dma.done [#allocation6], 1024
        $region80: #{tpu_custom_call.1} parent=71 // pred_fallthru
          _
        %p425 = scmp.lt.s32.totalorder %s29, 1
        %s426 = scalar_select %p425, %s29, 1
        %s427 = smul.addr %s426, 8
        %s428 = scalar_lea.vmem %s0, %s427
        %p429 = pneg %p50
        %p430 = pneg %p47
        %p431 = pneg %p71
        %p432 = pneg %p68
        %p433 = pneg %p92
        %p434 = pneg %p89
        %p435 = pneg %p113
        %p436 = pneg %p110
        %p437 = pneg %p134
        %p438 = pneg %p131
        %p439 = pneg %p155
        %p440 = pneg %p152
        %p441 = pneg %p176
        %p442 = pneg %p173
        %p443 = pneg %p197
        %p444 = pneg %p194
        %p445 = pneg %p218
        %p446 = pneg %p215
        %p447 = pneg %p239
        %p448 = pneg %p236
        %p449 = pneg %p260
        %p450 = pneg %p257
        %p451 = pneg %p281
        %p452 = pneg %p278
        %p453 = pneg %p302
        %p454 = pneg %p299
        %p455 = pneg %p328
        %p456 = pneg %p325
        %s457 = sand.u32 %s315, 1
        %s458 = scalar_lea.sflag [#allocation4], %s457
        %s459 = sand.u32 %s315, 1
        %s460 = smul.addr %s459, 8
        %s461 = scalar_lea.vmem [#allocation7], %s460
        %p462 = scmp.lt.s32.totalorder %s29, 1
        %s463 = scalar_select %p462, %s29, 1
        %s464 = smul.addr %s463, 8
        %s465 = scalar_lea.vmem %s0, %s464
        %v467 = vld [vmem:[%s1] sm:$0xf]
        %v468 = vld [vmem:[%s2] sm:$0x1]
        %v469 = vld [vmem:[%s3] sm:$0x1]
        %v470 = vld [vmem:[%s4] sm:$0x1]
        %v471 = vld [vmem:[#allocation2] sm:$0xf]
        %v472 = vld [vmem:[#allocation2 + $0x4] sm:$0xf]
        %v473 = vld [vmem:[#allocation2 + $0x8] sm:$0xf]
        %v474 = vld [vmem:[#allocation2 + $0xc] sm:$0xf]
        %v475 = vld [vmem:[#allocation2 + $0x10] sm:$0xf]
        %v476 = vld [vmem:[#allocation2 + $0x14] sm:$0xf]
        %v477 = vld [vmem:[#allocation2 + $0x18] sm:$0xf]
        %v478 = vld [vmem:[#allocation2 + $0x1c] sm:$0xf]
        %v479 = vld [vmem:[#allocation2 + $0x20] sm:$0xf]
        %v480 = vld [vmem:[#allocation2 + $0x24] sm:$0xf]
        %v481 = vld [vmem:[#allocation2 + $0x28] sm:$0xf]
        %v482 = vld [vmem:[#allocation2 + $0x2c] sm:$0xf]
        %v483 = vld [vmem:[#allocation2 + $0x30] sm:$0xf]
        %v484 = vld [vmem:[#allocation2 + $0x34] sm:$0xf]
        %v485 = vld [vmem:[#allocation2 + $0x38] sm:$0xf]
        %v486 = vld [vmem:[#allocation2 + $0x3c] sm:$0xf]
        %v487 = vld [vmem:[%s6] sm:$0x1]
        %v488 = vld [vmem:[%s7] sm:$0x1]
        %v489 = vld [vmem:[%s8] sm:$0x1]
        %v490 = vld [vmem:[#allocation5] sm:$0xf]
        %v491 = vld [vmem:[#allocation5 + $0x4] sm:$0xf]
        %v492 = vld [vmem:[#allocation5 + $0x8] sm:$0xf]
        %v493 = vld [vmem:[#allocation5 + $0xc] sm:$0xf]
        %v494 = vld [vmem:[#allocation5 + $0x10] sm:$0xf]
        %v495 = vld [vmem:[#allocation5 + $0x14] sm:$0xf]
        %v496 = vld [vmem:[#allocation5 + $0x18] sm:$0xf]
        %v497 = vld [vmem:[#allocation5 + $0x1c] sm:$0xf]
        %v498 = vld [vmem:[#allocation5 + $0x20] sm:$0xf]
        %v499 = vld [vmem:[#allocation5 + $0x24] sm:$0xf]
        %v500 = vld [vmem:[#allocation5 + $0x28] sm:$0xf]
        %v501 = vld [vmem:[#allocation5 + $0x2c] sm:$0xf]
        %v502 = vld [vmem:[#allocation5 + $0x30] sm:$0xf]
        %v503 = vld [vmem:[#allocation5 + $0x34] sm:$0xf]
        %v504 = vld [vmem:[#allocation5 + $0x38] sm:$0xf]
        %v505 = vld [vmem:[#allocation5 + $0x3c] sm:$0xf]
        %v506 = vld [vmem:[%s10] sm:$0x1]
        %v507 = vld [vmem:[%s11] sm:$0x1]
        %v508 = vld [vmem:[%s12] sm:$0x1]
        %v509 = vld [vmem:[%s465] sm:$0xff]
        %v510 = vpack.c.bf16 %v509, %v509
        %v512 = vlaneseq
        %v513 = vshrl.u32 %v512, 7
        %v514 = vsub.s32 0, %v513
        %v515 = vrot.slane %v468, %v514
        %vm517 = vcmask 64512
        %v519 = vsel %vm517, %v510, 0
        %vm521 = vcmask 1043456
        %v523 = vsel %vm521, %v467, 0
        %525 = vmatprep.subr.bf16.mxu0 0
        %526 = vmatpush1.bf16.msra.mxu0 %v523
        %527 = vmatprep.subr.bf16.mxu0 0
        %528 = vmatpush1.bf16.msra.mxu0 0
        %529 = vmatprep.subr.bf16.mxu0 0
        %530 = vmatpush1.bf16.msra.mxu0 0
        %531 = vmatprep.subr.bf16.mxu0 0
        %532 = vmatpush1.bf16.msra.mxu0 0
        %533 = vmatprep.subr.bf16.mxu0 0
        %534 = vmatpush1.bf16.msra.mxu0 0
        %535 = vmatprep.subr.bf16.mxu0 0
        %536 = vmatpush1.bf16.msra.mxu0 0
        %537 = vmatprep.subr.bf16.mxu0 0
        %538 = vmatpush1.bf16.msra.mxu0 0
        %539 = vmatprep.subr.bf16.mxu0 0
        %540 = vmatpush1.bf16.msra.mxu0 0
        %541 = vmatprep.subr.bf16.mxu0 0
        %542 = vmatpush1.bf16.msra.mxu0 0
        %543 = vmatprep.subr.bf16.mxu0 0
        %544 = vmatpush1.bf16.msra.mxu0 0
        %545 = vmatprep.subr.bf16.mxu0 0
        %546 = vmatpush1.bf16.msra.mxu0 0
        %547 = vmatprep.subr.bf16.mxu0 0
        %548 = vmatpush1.bf16.msra.mxu0 0
        %549 = vmatprep.subr.bf16.mxu0 0
        %550 = vmatpush1.bf16.msra.mxu0 0
        %551 = vmatprep.subr.bf16.mxu0 0
        %552 = vmatpush1.bf16.msra.mxu0 0
        %553 = vmatprep.subr.bf16.mxu0 0
        %554 = vmatpush1.bf16.msra.mxu0 0
        %555 = vmatprep.subr.bf16.mxu0 0
        %556 = vmatpush1.bf16.msra.mxu0 0
        %557 = vmatprep.mubr.bf16.mxu0 0
        %558 = vmatmul.mubr.bf16.gmra.mrb[0].mxu0 %v519
        %v559 = vpop.f32.mrb[0].mxu0
        %v560 = vadd.f32 %v515, %v559
        %v561 = vpop.f32.mrb[0].mxu0
        %v562 = vpop.f32.mrb[0].mxu0
        %v563 = vpop.f32.mrb[0].mxu0
        %564 = vdwg.mxu0
        %565 = vadd.xlane.f32.xlu0 %v560
        %v566 = vpop.xlane.xlu0 %565
        %v567 = vmul.f32 %v566, 0.03125
        %v568 = vsub.f32 %v560, %v567
        %v569 = vmul.f32 %v568, %v568
        %570 = vadd.xlane.f32.xlu0 %v569
        %v571 = vpop.xlane.xlu0 %570
        %v572 = vmul.f32 %v567, %v567
        %v573 = vmul.f32 %v572, 96.0
        %v574 = vsub.f32 %v571, %v573
        %v575 = vmax.f32 %v574, 0.0
        %v576 = vmul.f32 %v575, 0.03125
        %v577 = vadd.f32 %v576, 1e-05
        %v578 = vrsqrt.pop %v577
        %v579 = vmul.f32 %v568, %v578
        %v581 = vlaneseq
        %v582 = vshrl.u32 %v581, 7
        %v583 = vsub.s32 0, %v582
        %v584 = vrot.slane %v469, %v583
        %v586 = vmul.f32 %v579, %v584
        %v588 = vlaneseq
        %v589 = vshrl.u32 %v588, 7
        %v590 = vsub.s32 0, %v589
        %v591 = vrot.slane %v470, %v590
        %v593 = vadd.f32 %v586, %v591
        %v594 = vmax.f32 %v593, 0.0
        %v595 = vpack.c.bf16 %v594, %v594
        %v597 = vlaneseq
        %v598 = vshrl.u32 %v597, 7
        %v599 = vsub.s32 0, %v598
        %v600 = vrot.slane %v487, %v599
        %v618 = vunpack.c.l.b16 %v471
        %v619 = vunpack.c.l.b16 %v472
        %v620 = vunpack.c.l.b16 %v473
        %v621 = vunpack.c.l.b16 %v474
        %v622 = vunpack.c.l.b16 %v475
        %v623 = vunpack.c.l.b16 %v476
        %v624 = vunpack.c.l.b16 %v477
        %v625 = vunpack.c.l.b16 %v478
        %v626 = vunpack.c.l.b16 %v479
        %v627 = vunpack.c.l.b16 %v480
        %v628 = vunpack.c.l.b16 %v481
        %v629 = vunpack.c.l.b16 %v482
        %v630 = vunpack.c.l.b16 %v483
        %v631 = vunpack.c.l.b16 %v484
        %v632 = vunpack.c.l.b16 %v485
        %v633 = vunpack.c.l.b16 %v486
        %v634 = vpack.c.b16 %v619, %v618
        %v635 = vpack.c.b16 %v621, %v620
        %v636 = vpack.c.b16 %v623, %v622
        %v637 = vpack.c.b16 %v625, %v624
        %v638 = vpack.c.b16 %v627, %v626
        %v639 = vpack.c.b16 %v629, %v628
        %v640 = vpack.c.b16 %v631, %v630
        %v641 = vpack.c.b16 %v633, %v632
        %650 = vmatprep.subr.bf16.mxu0 0
        %651 = vmatpush1.bf16.msra.mxu0 %v634
        %652 = vmatprep.subr.bf16.mxu0 0
        %653 = vmatpush1.bf16.msra.mxu0 %v635
        %654 = vmatprep.subr.bf16.mxu0 0
        %655 = vmatpush1.bf16.msra.mxu0 %v636
        %656 = vmatprep.subr.bf16.mxu0 0
        %657 = vmatpush1.bf16.msra.mxu0 %v637
        %658 = vmatprep.subr.bf16.mxu0 0
        %659 = vmatpush1.bf16.msra.mxu0 %v638
        %660 = vmatprep.subr.bf16.mxu0 0
        %661 = vmatpush1.bf16.msra.mxu0 %v639
        %662 = vmatprep.subr.bf16.mxu0 0
        %663 = vmatpush1.bf16.msra.mxu0 %v640
        %664 = vmatprep.subr.bf16.mxu0 0
        %665 = vmatpush1.bf16.msra.mxu0 %v641
        %666 = vmatprep.subr.bf16.mxu0 0
        %667 = vmatpush1.bf16.msra.mxu0 0
        %668 = vmatprep.subr.bf16.mxu0 0
        %669 = vmatpush1.bf16.msra.mxu0 0
        %670 = vmatprep.subr.bf16.mxu0 0
        %671 = vmatpush1.bf16.msra.mxu0 0
        %672 = vmatprep.subr.bf16.mxu0 0
        %673 = vmatpush1.bf16.msra.mxu0 0
        %674 = vmatprep.subr.bf16.mxu0 0
        %675 = vmatpush1.bf16.msra.mxu0 0
        %676 = vmatprep.subr.bf16.mxu0 0
        %677 = vmatpush1.bf16.msra.mxu0 0
        %678 = vmatprep.subr.bf16.mxu0 0
        %679 = vmatpush1.bf16.msra.mxu0 0
        %680 = vmatprep.subr.bf16.mxu0 0
        %681 = vmatpush1.bf16.msra.mxu0 0
        %682 = vmatprep.mubr.bf16.mxu0 0
        %683 = vmatmul.mubr.bf16.gmra.mrb[0].mxu0 %v595
        %v684 = vpop.f32.mrb[0].mxu0
        %v685 = vadd.f32 %v600, %v684
        %v686 = vpop.f32.mrb[0].mxu0
        %v687 = vpop.f32.mrb[0].mxu0
        %v688 = vpop.f32.mrb[0].mxu0
        %689 = vdwg.mxu0
        %690 = vadd.xlane.f32.xlu0 %v685
        %v691 = vpop.xlane.xlu0 %690
        %v692 = vmul.f32 %v691, 0.03125
        %v693 = vsub.f32 %v685, %v692
        %v694 = vmul.f32 %v693, %v693
        %695 = vadd.xlane.f32.xlu0 %v694
        %v696 = vpop.xlane.xlu0 %695
        %v697 = vmul.f32 %v692, %v692
        %v698 = vmul.f32 %v697, 96.0
        %v699 = vsub.f32 %v696, %v698
        %v700 = vmax.f32 %v699, 0.0
        %v701 = vmul.f32 %v700, 0.03125
        %v702 = vadd.f32 %v701, 1e-05
        %v703 = vrsqrt.pop %v702
        %v704 = vmul.f32 %v693, %v703
        %v706 = vlaneseq
        %v707 = vshrl.u32 %v706, 7
        %v708 = vsub.s32 0, %v707
        %v709 = vrot.slane %v488, %v708
        %v711 = vmul.f32 %v704, %v709
        %v713 = vlaneseq
        %v714 = vshrl.u32 %v713, 7
        %v715 = vsub.s32 0, %v714
        %v716 = vrot.slane %v489, %v715
        %v718 = vadd.f32 %v711, %v716
        %v719 = vmax.f32 %v718, 0.0
        %v720 = vpack.c.bf16 %v719, %v719
        %v722 = vlaneseq
        %v723 = vshrl.u32 %v722, 7
        %v724 = vsub.s32 0, %v723
        %v725 = vrot.slane %v506, %v724
        %v743 = vunpack.c.l.b16 %v490
        %v744 = vunpack.c.l.b16 %v491
        %v745 = vunpack.c.l.b16 %v492
        %v746 = vunpack.c.l.b16 %v493
        %v747 = vunpack.c.l.b16 %v494
        %v748 = vunpack.c.l.b16 %v495
        %v749 = vunpack.c.l.b16 %v496
        %v750 = vunpack.c.l.b16 %v497
        %v751 = vunpack.c.l.b16 %v498
        %v752 = vunpack.c.l.b16 %v499
        %v753 = vunpack.c.l.b16 %v500
        %v754 = vunpack.c.l.b16 %v501
        %v755 = vunpack.c.l.b16 %v502
        %v756 = vunpack.c.l.b16 %v503
        %v757 = vunpack.c.l.b16 %v504
        %v758 = vunpack.c.l.b16 %v505
        %v759 = vpack.c.b16 %v744, %v743
        %v760 = vpack.c.b16 %v746, %v745
        %v761 = vpack.c.b16 %v748, %v747
        %v762 = vpack.c.b16 %v750, %v749
        %v763 = vpack.c.b16 %v752, %v751
        %v764 = vpack.c.b16 %v754, %v753
        %v765 = vpack.c.b16 %v756, %v755
        %v766 = vpack.c.b16 %v758, %v757
        %775 = vmatprep.subr.bf16.mxu0 0
        %776 = vmatpush1.bf16.msra.mxu0 %v759
        %777 = vmatprep.subr.bf16.mxu0 0
        %778 = vmatpush1.bf16.msra.mxu0 %v760
        %779 = vmatprep.subr.bf16.mxu0 0
        %780 = vmatpush1.bf16.msra.mxu0 %v761
        %781 = vmatprep.subr.bf16.mxu0 0
        %782 = vmatpush1.bf16.msra.mxu0 %v762
        %783 = vmatprep.subr.bf16.mxu0 0
        %784 = vmatpush1.bf16.msra.mxu0 %v763
        %785 = vmatprep.subr.bf16.mxu0 0
        %786 = vmatpush1.bf16.msra.mxu0 %v764
        %787 = vmatprep.subr.bf16.mxu0 0
        %788 = vmatpush1.bf16.msra.mxu0 %v765
        %789 = vmatprep.subr.bf16.mxu0 0
        %790 = vmatpush1.bf16.msra.mxu0 %v766
        %791 = vmatprep.subr.bf16.mxu0 0
        %792 = vmatpush1.bf16.msra.mxu0 0
        %793 = vmatprep.subr.bf16.mxu0 0
        %794 = vmatpush1.bf16.msra.mxu0 0
        %795 = vmatprep.subr.bf16.mxu0 0
        %796 = vmatpush1.bf16.msra.mxu0 0
        %797 = vmatprep.subr.bf16.mxu0 0
        %798 = vmatpush1.bf16.msra.mxu0 0
        %799 = vmatprep.subr.bf16.mxu0 0
        %800 = vmatpush1.bf16.msra.mxu0 0
        %801 = vmatprep.subr.bf16.mxu0 0
        %802 = vmatpush1.bf16.msra.mxu0 0
        %803 = vmatprep.subr.bf16.mxu0 0
        %804 = vmatpush1.bf16.msra.mxu0 0
        %805 = vmatprep.subr.bf16.mxu0 0
        %806 = vmatpush1.bf16.msra.mxu0 0
        %807 = vmatprep.mubr.bf16.mxu0 0
        %808 = vmatmul.mubr.bf16.gmra.mrb[0].mxu0 %v720
        %v809 = vpop.f32.mrb[0].mxu0
        %v810 = vadd.f32 %v725, %v809
        %v811 = vpop.f32.mrb[0].mxu0
        %v812 = vpop.f32.mrb[0].mxu0
        %v813 = vpop.f32.mrb[0].mxu0
        %814 = vdwg.mxu0
        %815 = vadd.xlane.f32.xlu0 %v810
        %v816 = vpop.xlane.xlu0 %815
        %v817 = vmul.f32 %v816, 0.03125
        %v818 = vsub.f32 %v810, %v817
        %v819 = vmul.f32 %v818, %v818
        %820 = vadd.xlane.f32.xlu0 %v819
        %v821 = vpop.xlane.xlu0 %820
        %v822 = vmul.f32 %v817, %v817
        %v823 = vmul.f32 %v822, 96.0
        %v824 = vsub.f32 %v821, %v823
        %v825 = vmax.f32 %v824, 0.0
        %v826 = vmul.f32 %v825, 0.03125
        %v827 = vadd.f32 %v826, 1e-05
        %v828 = vrsqrt.pop %v827
        %v829 = vmul.f32 %v818, %v828
        %v831 = vlaneseq
        %v832 = vshrl.u32 %v831, 7
        %v833 = vsub.s32 0, %v832
        %v834 = vrot.slane %v507, %v833
        %v836 = vmul.f32 %v829, %v834
        %v838 = vlaneseq
        %v839 = vshrl.u32 %v838, 7
        %v840 = vsub.s32 0, %v839
        %v841 = vrot.slane %v508, %v840
        %v843 = vadd.f32 %v836, %v841
        %844 = vst [vmem:[%s461] sm:$0xff] %v843
        %s845 = sand.u32 %s315, 1
        %s846 = scalar_lea.sflag [#allocation4], %s845
        %s847 = sand.u32 %s315, 1
        %s848 = smul.addr %s847, 8
        %s849 = scalar_lea.vmem [#allocation7], %s848
        // Predicated region
        $region81: #{tpu_custom_call.1} parent=71 // pred_check
          %p850 = pneg %p325
        $region82: #{tpu_custom_call.1} parent=71 // pred_check_branch
          %852 = sbr.rel (%p850) target = $region84
        $region83: #{tpu_custom_call.1} parent=71 // pred_region
          %s854 = ssub.s32 128, 128
          %855 = vsyncadd %s846, %s854
          %s856 = smul.addr %s29, 128
          %s857 = scalar_lea.hbm %s13, %s856
          %s859 = sshll.u32 %s849, 4
          %s860 = int_to_ptr.vmem [resolvable:$true] %s859
          %862 = dma.vmem_to_hbm [thread:$0]  %s860, 128, %s857, %s846
        $region84: #{tpu_custom_call.1} parent=71 // pred_fallthru
          _
      $region72: #{tpu_custom_call.1} parent=5 // pred_fallthru
        _
      %p863 = scmp.le.s32.totalorder 2, %s24
      // Predicated region
      $region85: #{tpu_custom_call.1} parent=5 // pred_check
        %p864 = pneg %p863
      $region86: #{tpu_custom_call.1} parent=5 // pred_check_branch
        %866 = sbr.rel (%p864) target = $region88
      $region87: #{tpu_custom_call.1} parent=5 // pred_region
        %s867 = ssub.s32 %s24, 2
        // Predicated region
        $region89: #{tpu_custom_call.1} parent=87 // pred_check
          %p868 = pneg %p331
        $region90: #{tpu_custom_call.1} parent=87 // pred_check_branch
          %870 = sbr.rel (%p868) target = $region92
        $region91: #{tpu_custom_call.1} parent=87 // pred_region
          %s871 = sand.u32 %s316, 1
          %s872 = scalar_lea.sflag [#allocation4], %s871
          %s873 = sand.u32 %s316, 1
          %s874 = smul.addr %s873, 8
          %s875 = scalar_lea.vmem [#allocation7], %s874
          %876 = dma.done %s872, 128
        $region92: #{tpu_custom_call.1} parent=87 // pred_fallthru
          _
      $region88: #{tpu_custom_call.1} parent=5 // pred_fallthru
        _
    $region6: #{tpu_custom_call.1} parent=1 // loop_footer
      %s28 = sadd.s32 1, %s24
    $region7: #{tpu_custom_call.1} parent=1 // loop_footer_branch
      %23 = sbr.rel target = $region3
    $region8: #{tpu_custom_call.1} parent=1 // loop_exit
      _
    %877 = vsyncpa [#allocation3], 1
    %s878 = scalar_lea.sflag [#allocation3], 1
    %879 = vsyncpa %s878, 1
    %880 = vsyncpa [#allocation6], 1
    %881 = vsyncpa [#allocation4], 1
    %s882 = scalar_lea.sflag [#allocation4], 1
    %883 = vsyncpa %s882, 1

// kernel: tpu_custom_call.1
$region0: #{tpu_custom_call.1}
  #allocation0 [shape = 'u32[]', space=smem, size = 0x4, offset = 0x4, fixed_abs, tag = 'smem constant byte address 0x4 - core index']
  #allocation1 [shape = 'u32[144,128]{1,0:T(1,128)}', space=vmem, size = 0x12000, scoped, tag = 'internal scratch']
  %s0 = inlined_call_operand.vmem [shape: f32[16,8], index: 0, kind: input, shape index: {}]
  %s1 = inlined_call_operand.vmem [shape: bf16[8,128], index: 1, kind: input, shape index: {}]
  %s2 = inlined_call_operand.vmem [shape: f32[1,128], index: 2, kind: input, shape index: {}]
  %s3 = inlined_call_operand.vmem [shape: f32[1,128], index: 3, kind: input, shape index: {}]
  %s4 = inlined_call_operand.vmem [shape: f32[1,128], index: 4, kind: input, shape index: {}]
  %s5 = inlined_call_operand.hbm [shape: bf16[128,128], index: 5, kind: input, shape index: {}]
  %s6 = inlined_call_operand.vmem [shape: f32[1,128], index: 6, kind: input, shape index: {}]
  %s7 = inlined_call_operand.vmem [shape: f32[1,128], index: 7, kind: input, shape index: {}]
  %s8 = inlined_call_operand.vmem [shape: f32[1,128], index: 8, kind: input, shape index: {}]
  %s9 = inlined_call_operand.hbm [shape: bf16[128,128], index: 9, kind: input, shape index: {}]
  %s10 = inlined_call_operand.vmem [shape: f32[1,128], index: 10, kind: input, shape index: {}]
  %s11 = inlined_call_operand.vmem [shape: f32[1,128], index: 11, kind: input, shape index: {}]
  %s12 = inlined_call_operand.vmem [shape: f32[1,128], index: 12, kind: input, shape index: {}]
  %s13 = inlined_call_operand.hbm [shape: f32[16,128], index: 13, kind: output, shape index: {}]
  %s14 = sld [smem:[#allocation0]]
  $region93: #{tpu_custom_call.1} parent=0
    _
  %s16 = ssub.s32 1, %s14
  %s17 = scalar_select 0, %s16, %s14
  $region1: #{tpu_custom_call.1} parent=0
    #allocation2 [shape = 'u8[32768]{0}', space=vmem, size = 0x8000, scoped, tag = 'input window, operand 5, single buffered']
    #allocation3 [shape = 's32[2]{0}', space=sflag, size = 0x8, scoped, tag = 'scoped memory for tpu_custom_call.1']
    #allocation4 [shape = 's32[2]{0}', space=sflag, size = 0x8, scoped, tag = 'scoped memory for tpu_custom_call.1']
    #allocation5 [shape = 'u8[32768]{0}', space=vmem, size = 0x8000, scoped, tag = 'input window, operand 9, single buffered']
    #allocation6 [shape = 's32[1]{0}', space=sflag, size = 0x4, scoped, tag = 'scoped memory for tpu_custom_call.1']
    #allocation7 [shape = 'u8[8192]{0}', space=vmem, size = 0x2000, scoped, tag = 'output window, operand 0']
    %18 = vsyncpa [#allocation3], 0
    %19 = vsyncpa [#allocation6], 0
    %20 = vsyncpa [#allocation4], 0
    %s21 = scalar_lea.sflag [#allocation4], 1
    %22 = vsyncpa %s21, 0
    loop: start=0, step=1, limit=4
    $region2: #{tpu_custom_call.1} parent=1 // loop_pre_header
      _
    $region3: #{tpu_custom_call.1} parent=1 // loop_header
      %s24 = sphi 0, %s28
      %p25 = scmp.ge.s32.totalorder %s24, 4
      %s34 = sphi 0, %s36
      %s37 = sphi 0, %s34
      %s38 = sphi 0, %s37
      %s54 = sphi 0, %s38
      %s58 = sphi 0, %s58
      %s60 = sphi 0, %s58
      %s61 = sphi 0, %s60
      %s75 = sphi 0, %s61
      %s79 = sphi 0, %s79
      %s81 = sphi 0, %s79
      %s82 = sphi 0, %s81
      %s96 = sphi 0, %s82
      %s100 = sphi 0, %s100
      %s102 = sphi 0, %s100
      %s103 = sphi 0, %s102
      %s117 = sphi 0, %s103
      %s121 = sphi 0, %s121
      %s123 = sphi 0, %s121
      %s124 = sphi 0, %s123
      %s138 = sphi 0, %s124
      %s142 = sphi 0, %s142
      %s144 = sphi 0, %s142
      %s145 = sphi 0, %s144
      %s159 = sphi 0, %s145
      %s163 = sphi 0, %s163
      %s165 = sphi 0, %s163
      %s166 = sphi 0, %s165
      %s180 = sphi 0, %s166
      %s184 = sphi 0, %s184
      %s186 = sphi 0, %s184
      %s187 = sphi 0, %s186
      %s201 = sphi 0, %s187
      %s205 = sphi 0, %s205
      %s207 = sphi 0, %s205
      %s208 = sphi 0, %s207
      %s222 = sphi 0, %s208
      %s226 = sphi 0, %s226
      %s228 = sphi 0, %s226
      %s229 = sphi 0, %s228
      %s243 = sphi 0, %s229
      %s247 = sphi 0, %s247
      %s249 = sphi 0, %s247
      %s250 = sphi 0, %s249
      %s264 = sphi 0, %s250
      %s268 = sphi 0, %s268
      %s270 = sphi 0, %s268
      %s271 = sphi 0, %s270
      %s285 = sphi 0, %s271
      %s289 = sphi 0, %s289
      %s291 = sphi 0, %s289
      %s292 = sphi 0, %s291
      %s306 = sphi 0, %s292
      %s312 = sphi 0, %s314
      %s315 = sphi 0, %s312
      %s316 = sphi 0, %s315
      %s332 = sphi 0, %s316
    $region4: #{tpu_custom_call.1} parent=1 // loop_header_branch
      %27 = sbr.rel (%p25) target = $region8
    $region5: #{tpu_custom_call.1} parent=1 // loop_body
      %s29 = ssub.s32 %s24, 1
      %s30 = ssub.s32 %s24, 2
      %s31 = sadd.s32 %s24, 1
      %s32 = ssub.s32 %s24, %s31
      %p33 = scmp.eq.s32.totalorder %s32, 0
      %s35 = sadd.s32 %s34, 1
      %s36 = scalar_select %p33, %s34, %s35
      %p39 = pneg %p33
      %p40 = scmp.eq.s32.totalorder %s24, 1
      %p41 = por %p39, %p40
      %p42 = scmp.ne.s32.totalorder %s34, %s37
      %p43 = scmp.eq.s32.totalorder %s24, 0
      %p44 = por %p42, %p43
      %p45 = scmp.ne.s32.totalorder %s34, %s37
      %p46 = scmp.eq.s32.totalorder %s29, 1
      %p47 = por %p45, %p46
      %p48 = scmp.ne.s32.totalorder %s37, %s38
      %p49 = scmp.eq.s32.totalorder %s29, 0
      %p50 = por %p48, %p49
      %p51 = scmp.ne.s32.totalorder %s37, %s38
      %p52 = scmp.eq.s32.totalorder %s30, 1
      %p53 = por %p51, %p52
      %p55 = scmp.ne.s32.totalorder %s38, %s54
      %p56 = scmp.eq.s32.totalorder %s30, 0
      %p57 = por %p55, %p56
      %s59 = sadd.s32 %s58, 1
      %p62 = scmp.eq.s32.totalorder %s24, 1
      %p63 = scmp.ne.s32.totalorder %s58, %s60
      %p64 = scmp.eq.s32.totalorder %s24, 0
      %p65 = por %p63, %p64
      %p66 = scmp.ne.s32.totalorder %s58, %s60
      %p67 = scmp.eq.s32.totalorder %s29, 1
      %p68 = por %p66, %p67
      %p69 = scmp.ne.s32.totalorder %s60, %s61
      %p70 = scmp.eq.s32.totalorder %s29, 0
      %p71 = por %p69, %p70
      %p72 = scmp.ne.s32.totalorder %s60, %s61
      %p73 = scmp.eq.s32.totalorder %s30, 1
      %p74 = por %p72, %p73
      %p76 = scmp.ne.s32.totalorder %s61, %s75
      %p77 = scmp.eq.s32.totalorder %s30, 0
      %p78 = por %p76, %p77
      %s80 = sadd.s32 %s79, 1
      %p83 = scmp.eq.s32.totalorder %s24, 1
      %p84 = scmp.ne.s32.totalorder %s79, %s81
      %p85 = scmp.eq.s32.totalorder %s24, 0
      %p86 = por %p84, %p85
      %p87 = scmp.ne.s32.totalorder %s79, %s81
      %p88 = scmp.eq.s32.totalorder %s29, 1
      %p89 = por %p87, %p88
      %p90 = scmp.ne.s32.totalorder %s81, %s82
      %p91 = scmp.eq.s32.totalorder %s29, 0
      %p92 = por %p90, %p91
      %p93 = scmp.ne.s32.totalorder %s81, %s82
      %p94 = scmp.eq.s32.totalorder %s30, 1
      %p95 = por %p93, %p94
      %p97 = scmp.ne.s32.totalorder %s82, %s96
      %p98 = scmp.eq.s32.totalorder %s30, 0
      %p99 = por %p97, %p98
      %s101 = sadd.s32 %s100, 1
      %p104 = scmp.eq.s32.totalorder %s24, 1
      %p105 = scmp.ne.s32.totalorder %s100, %s102
      %p106 = scmp.eq.s32.totalorder %s24, 0
      %p107 = por %p105, %p106
      %p108 = scmp.ne.s32.totalorder %s100, %s102
      %p109 = scmp.eq.s32.totalorder %s29, 1
      %p110 = por %p108, %p109
      %p111 = scmp.ne.s32.totalorder %s102, %s103
      %p112 = scmp.eq.s32.totalorder %s29, 0
      %p113 = por %p111, %p112
      %p114 = scmp.ne.s32.totalorder %s102, %s103
      %p115 = scmp.eq.s32.totalorder %s30, 1
      %p116 = por %p114, %p115
      %p118 = scmp.ne.s32.totalorder %s103, %s117
      %p119 = scmp.eq.s32.totalorder %s30, 0
      %p120 = por %p118, %p119
      %s122 = sadd.s32 %s121, 1
      %p125 = scmp.eq.s32.totalorder %s24, 1
      %p126 = scmp.ne.s32.totalorder %s121, %s123
      %p127 = scmp.eq.s32.totalorder %s24, 0
      %p128 = por %p126, %p127
      %p129 = scmp.ne.s32.totalorder %s121, %s123
      %p130 = scmp.eq.s32.totalorder %s29, 1
      %p131 = por %p129, %p130
      %p132 = scmp.ne.s32.totalorder %s123, %s124
      %p133 = scmp.eq.s32.totalorder %s29, 0
      %p134 = por %p132, %p133
      %p135 = scmp.ne.s32.totalorder %s123, %s124
      %p136 = scmp.eq.s32.totalorder %s30, 1
      %p137 = por %p135, %p136
      %p139 = scmp.ne.s32.totalorder %s124, %s138
      %p140 = scmp.eq.s32.totalorder %s30, 0
      %p141 = por %p139, %p140
      %s143 = sadd.s32 %s142, 1
      %p146 = scmp.eq.s32.totalorder %s24, 1
      %p147 = scmp.ne.s32.totalorder %s142, %s144
      %p148 = scmp.eq.s32.totalorder %s24, 0
      %p149 = por %p147, %p148
      %p150 = scmp.ne.s32.totalorder %s142, %s144
      %p151 = scmp.eq.s32.totalorder %s29, 1
      %p152 = por %p150, %p151
      %p153 = scmp.ne.s32.totalorder %s144, %s145
      %p154 = scmp.eq.s32.totalorder %s29, 0
      %p155 = por %p153, %p154
      %p156 = scmp.ne.s32.totalorder %s144, %s145
      %p157 = scmp.eq.s32.totalorder %s30, 1
      %p158 = por %p156, %p157
      %p160 = scmp.ne.s32.totalorder %s145, %s159
      %p161 = scmp.eq.s32.totalorder %s30, 0
      %p162 = por %p160, %p161
      %s164 = sadd.s32 %s163, 1
      %p167 = scmp.eq.s32.totalorder %s24, 1
      %p168 = scmp.ne.s32.totalorder %s163, %s165
      %p169 = scmp.eq.s32.totalorder %s24, 0
      %p170 = por %p168, %p169
      %p171 = scmp.ne.s32.totalorder %s163, %s165
      %p172 = scmp.eq.s32.totalorder %s29, 1
      %p173 = por %p171, %p172
      %p174 = scmp.ne.s32.totalorder %s165, %s166
      %p175 = scmp.eq.s32.totalorder %s29, 0
      %p176 = por %p174, %p175
      %p177 = scmp.ne.s32.totalorder %s165, %s166
      %p178 = scmp.eq.s32.totalorder %s30, 1
      %p179 = por %p177, %p178
      %p181 = scmp.ne.s32.totalorder %s166, %s180
      %p182 = scmp.eq.s32.totalorder %s30, 0
      %p183 = por %p181, %p182
      %s185 = sadd.s32 %s184, 1
      %p188 = scmp.eq.s32.totalorder %s24, 1
      %p189 = scmp.ne.s32.totalorder %s184, %s186
      %p190 = scmp.eq.s32.totalorder %s24, 0
      %p191 = por %p189, %p190
      %p192 = scmp.ne.s32.totalorder %s184, %s186
      %p193 = scmp.eq.s32.totalorder %s29, 1
      %p194 = por %p192, %p193
      %p195 = scmp.ne.s32.totalorder %s186, %s187
      %p196 = scmp.eq.s32.totalorder %s29, 0
      %p197 = por %p195, %p196
      %p198 = scmp.ne.s32.totalorder %s186, %s187
      %p199 = scmp.eq.s32.totalorder %s30, 1
      %p200 = por %p198, %p199
      %p202 = scmp.ne.s32.totalorder %s187, %s201
      %p203 = scmp.eq.s32.totalorder %s30, 0
      %p204 = por %p202, %p203
      %s206 = sadd.s32 %s205, 1
      %p209 = scmp.eq.s32.totalorder %s24, 1
      %p210 = scmp.ne.s32.totalorder %s205, %s207
      %p211 = scmp.eq.s32.totalorder %s24, 0
      %p212 = por %p210, %p211
      %p213 = scmp.ne.s32.totalorder %s205, %s207
      %p214 = scmp.eq.s32.totalorder %s29, 1
      %p215 = por %p213, %p214
      %p216 = scmp.ne.s32.totalorder %s207, %s208
      %p217 = scmp.eq.s32.totalorder %s29, 0
      %p218 = por %p216, %p217
      %p219 = scmp.ne.s32.totalorder %s207, %s208
      %p220 = scmp.eq.s32.totalorder %s30, 1
      %p221 = por %p219, %p220
      %p223 = scmp.ne.s32.totalorder %s208, %s222
      %p224 = scmp.eq.s32.totalorder %s30, 0
      %p225 = por %p223, %p224
      %s227 = sadd.s32 %s226, 1
      %p230 = scmp.eq.s32.totalorder %s24, 1
      %p231 = scmp.ne.s32.totalorder %s226, %s228
      %p232 = scmp.eq.s32.totalorder %s24, 0
      %p233 = por %p231, %p232
      %p234 = scmp.ne.s32.totalorder %s226, %s228
      %p235 = scmp.eq.s32.totalorder %s29, 1
      %p236 = por %p234, %p235
      %p237 = scmp.ne.s32.totalorder %s228, %s229
      %p238 = scmp.eq.s32.totalorder %s29, 0
      %p239 = por %p237, %p238
      %p240 = scmp.ne.s32.totalorder %s228, %s229
      %p241 = scmp.eq.s32.totalorder %s30, 1
      %p242 = por %p240, %p241
      %p244 = scmp.ne.s32.totalorder %s229, %s243
      %p245 = scmp.eq.s32.totalorder %s30, 0
      %p246 = por %p244, %p245
      %s248 = sadd.s32 %s247, 1
      %p251 = scmp.eq.s32.totalorder %s24, 1
      %p252 = scmp.ne.s32.totalorder %s247, %s249
      %p253 = scmp.eq.s32.totalorder %s24, 0
      %p254 = por %p252, %p253
      %p255 = scmp.ne.s32.totalorder %s247, %s249
      %p256 = scmp.eq.s32.totalorder %s29, 1
      %p257 = por %p255, %p256
      %p258 = scmp.ne.s32.totalorder %s249, %s250
      %p259 = scmp.eq.s32.totalorder %s29, 0
      %p260 = por %p258, %p259
      %p261 = scmp.ne.s32.totalorder %s249, %s250
      %p262 = scmp.eq.s32.totalorder %s30, 1
      %p263 = por %p261, %p262
      %p265 = scmp.ne.s32.totalorder %s250, %s264
      %p266 = scmp.eq.s32.totalorder %s30, 0
      %p267 = por %p265, %p266
      %s269 = sadd.s32 %s268, 1
      %p272 = scmp.eq.s32.totalorder %s24, 1
      %p273 = scmp.ne.s32.totalorder %s268, %s270
      %p274 = scmp.eq.s32.totalorder %s24, 0
      %p275 = por %p273, %p274
      %p276 = scmp.ne.s32.totalorder %s268, %s270
      %p277 = scmp.eq.s32.totalorder %s29, 1
      %p278 = por %p276, %p277
      %p279 = scmp.ne.s32.totalorder %s270, %s271
      %p280 = scmp.eq.s32.totalorder %s29, 0
      %p281 = por %p279, %p280
      %p282 = scmp.ne.s32.totalorder %s270, %s271
      %p283 = scmp.eq.s32.totalorder %s30, 1
      %p284 = por %p282, %p283
      %p286 = scmp.ne.s32.totalorder %s271, %s285
      %p287 = scmp.eq.s32.totalorder %s30, 0
      %p288 = por %p286, %p287
      %s290 = sadd.s32 %s289, 1
      %p293 = scmp.eq.s32.totalorder %s24, 1
      %p294 = scmp.ne.s32.totalorder %s289, %s291
      %p295 = scmp.eq.s32.totalorder %s24, 0
      %p296 = por %p294, %p295
      %p297 = scmp.ne.s32.totalorder %s289, %s291
      %p298 = scmp.eq.s32.totalorder %s29, 1
      %p299 = por %p297, %p298
      %p300 = scmp.ne.s32.totalorder %s291, %s292
      %p301 = scmp.eq.s32.totalorder %s29, 0
      %p302 = por %p300, %p301
      %p303 = scmp.ne.s32.totalorder %s291, %s292
      %p304 = scmp.eq.s32.totalorder %s30, 1
      %p305 = por %p303, %p304
      %p307 = scmp.ne.s32.totalorder %s292, %s306
      %p308 = scmp.eq.s32.totalorder %s30, 0
      %p309 = por %p307, %p308
      %s310 = ssub.s32 %s24, %s31
      %p311 = scmp.eq.s32.totalorder %s310, 0
      %s313 = sadd.s32 %s312, 1
      %s314 = scalar_select %p311, %s312, %s313
      %p317 = pneg %p311
      %p318 = scmp.eq.s32.totalorder %s24, 1
      %p319 = por %p317, %p318
      %p320 = scmp.ne.s32.totalorder %s312, %s315
      %p321 = scmp.eq.s32.totalorder %s24, 0
      %p322 = por %p320, %p321
      %p323 = scmp.ne.s32.totalorder %s312, %s315
      %p324 = scmp.eq.s32.totalorder %s29, 1
      %p325 = por %p323, %p324
      %p326 = scmp.ne.s32.totalorder %s315, %s316
      %p327 = scmp.eq.s32.totalorder %s29, 0
      %p328 = por %p326, %p327
      %p329 = scmp.ne.s32.totalorder %s315, %s316
      %p330 = scmp.eq.s32.totalorder %s30, 1
      %p331 = por %p329, %p330
      %p333 = scmp.ne.s32.totalorder %s316, %s332
      %p334 = scmp.eq.s32.totalorder %s30, 0
      %p335 = por %p333, %p334
      %p336 = scmp.le.s32.totalorder 1, %s24
      %p337 = scmp.lt.s32.totalorder %s24, 3
      %p338 = pnand %p336, %p337
      %p339 = pneg %p338
      // Predicated region
      $region9: #{tpu_custom_call.1} parent=5 // pred_check
        _
      $region10: #{tpu_custom_call.1} parent=5 // pred_check_branch
        %341 = sbr.rel (%p338) target = $region12
      $region11: #{tpu_custom_call.1} parent=5 // pred_region
        %s342 = ssub.s32 %s24, 1
        // Predicated region
        $region13: #{tpu_custom_call.1} parent=11 // pred_check
          %p343 = pneg %p71
        $region14: #{tpu_custom_call.1} parent=11 // pred_check_branch
          %345 = sbr.rel (%p343) target = $region16
        $region15: #{tpu_custom_call.1} parent=11 // pred_region
          _
        $region16: #{tpu_custom_call.1} parent=11 // pred_fallthru
          _
        // Predicated region
        $region17: #{tpu_custom_call.1} parent=11 // pred_check
          %p346 = pneg %p92
        $region18: #{tpu_custom_call.1} parent=11 // pred_check_branch
          %348 = sbr.rel (%p346) target = $region20
        $region19: #{tpu_custom_call.1} parent=11 // pred_region
          _
        $region20: #{tpu_custom_call.1} parent=11 // pred_fallthru
          _
        // Predicated region
        $region21: #{tpu_custom_call.1} parent=11 // pred_check
          %p349 = pneg %p113
        $region22: #{tpu_custom_call.1} parent=11 // pred_check_branch
          %351 = sbr.rel (%p349) target = $region24
        $region23: #{tpu_custom_call.1} parent=11 // pred_region
          _
        $region24: #{tpu_custom_call.1} parent=11 // pred_fallthru
          _
        // Predicated region
        $region25: #{tpu_custom_call.1} parent=11 // pred_check
          %p352 = pneg %p134
        $region26: #{tpu_custom_call.1} parent=11 // pred_check_branch
          %354 = sbr.rel (%p352) target = $region28
        $region27: #{tpu_custom_call.1} parent=11 // pred_region
          _
        $region28: #{tpu_custom_call.1} parent=11 // pred_fallthru
          _
        // Predicated region
        $region29: #{tpu_custom_call.1} parent=11 // pred_check
          %p355 = pneg %p155
        $region30: #{tpu_custom_call.1} parent=11 // pred_check_branch
          %357 = sbr.rel (%p355) target = $region32
        $region31: #{tpu_custom_call.1} parent=11 // pred_region
          %s359 = ssub.s32 1024, 1024
          %360 = vsyncadd [#allocation3], %s359
          %s361 = sshll.u32 [#allocation2], 4
          %s362 = int_to_ptr.vmem [resolvable:$true] %s361
          %367 = dma.hbm_to_vmem [thread:$0]  %s5, 1024, %s362, [#allocation3], 64, 64, 4
        $region32: #{tpu_custom_call.1} parent=11 // pred_fallthru
          _
        // Predicated region
        $region33: #{tpu_custom_call.1} parent=11 // pred_check
          %p368 = pneg %p176
        $region34: #{tpu_custom_call.1} parent=11 // pred_check_branch
          %370 = sbr.rel (%p368) target = $region36
        $region35: #{tpu_custom_call.1} parent=11 // pred_region
          _
        $region36: #{tpu_custom_call.1} parent=11 // pred_fallthru
          _
        // Predicated region
        $region37: #{tpu_custom_call.1} parent=11 // pred_check
          %p371 = pneg %p197
        $region38: #{tpu_custom_call.1} parent=11 // pred_check_branch
          %373 = sbr.rel (%p371) target = $region40
        $region39: #{tpu_custom_call.1} parent=11 // pred_region
          _
        $region40: #{tpu_custom_call.1} parent=11 // pred_fallthru
          _
        // Predicated region
        $region41: #{tpu_custom_call.1} parent=11 // pred_check
          %p374 = pneg %p218
        $region42: #{tpu_custom_call.1} parent=11 // pred_check_branch
          %376 = sbr.rel (%p374) target = $region44
        $region43: #{tpu_custom_call.1} parent=11 // pred_region
          _
        $region44: #{tpu_custom_call.1} parent=11 // pred_fallthru
          _
        // Predicated region
        $region45: #{tpu_custom_call.1} parent=11 // pred_check
          %p377 = pneg %p239
        $region46: #{tpu_custom_call.1} parent=11 // pred_check_branch
          %379 = sbr.rel (%p377) target = $region48
        $region47: #{tpu_custom_call.1} parent=11 // pred_region
          %s381 = ssub.s32 1024, 1024
          %382 = vsyncadd [#allocation6], %s381
          %s383 = sshll.u32 [#allocation5], 4
          %s384 = int_to_ptr.vmem [resolvable:$true] %s383
          %389 = dma.hbm_to_vmem [thread:$0]  %s9, 1024, %s384, [#allocation6], 64, 64, 4
        $region48: #{tpu_custom_call.1} parent=11 // pred_fallthru
          _
        // Predicated region
        $region49: #{tpu_custom_call.1} parent=11 // pred_check
          %p390 = pneg %p260
        $region50: #{tpu_custom_call.1} parent=11 // pred_check_branch
          %392 = sbr.rel (%p390) target = $region52
        $region51: #{tpu_custom_call.1} parent=11 // pred_region
          _
        $region52: #{tpu_custom_call.1} parent=11 // pred_fallthru
          _
        // Predicated region
        $region53: #{tpu_custom_call.1} parent=11 // pred_check
          %p393 = pneg %p281
        $region54: #{tpu_custom_call.1} parent=11 // pred_check_branch
          %395 = sbr.rel (%p393) target = $region56
        $region55: #{tpu_custom_call.1} parent=11 // pred_region
          _
        $region56: #{tpu_custom_call.1} parent=11 // pred_fallthru
          _
        // Predicated region
        $region57: #{tpu_custom_call.1} parent=11 // pred_check
          %p396 = pneg %p302
        $region58: #{tpu_custom_call.1} parent=11 // pred_check_branch
          %398 = sbr.rel (%p396) target = $region60
        $region59: #{tpu_custom_call.1} parent=11 // pred_region
          _
        $region60: #{tpu_custom_call.1} parent=11 // pred_fallthru
          _
      $region12: #{tpu_custom_call.1} parent=5 // pred_fallthru
        _
      %p399 = scmp.lt.s32.totalorder %s24, 2
      // Predicated region
      $region61: #{tpu_custom_call.1} parent=5 // pred_check
        %p400 = pneg %p399
      $region62: #{tpu_custom_call.1} parent=5 // pred_check_branch
        %402 = sbr.rel (%p400) target = $region64
      $region63: #{tpu_custom_call.1} parent=5 // pred_region
        // Predicated region
        $region65: #{tpu_custom_call.1} parent=63 // pred_check
          %p403 = pneg %p44
        $region66: #{tpu_custom_call.1} parent=63 // pred_check_branch
          %405 = sbr.rel (%p403) target = $region68
        $region67: #{tpu_custom_call.1} parent=63 // pred_region
          %p406 = scmp.lt.s32.totalorder %s24, 1
          %s407 = scalar_select %p406, %s24, 1
          %s408 = smul.addr %s407, 8
          %s409 = scalar_lea.vmem %s0, %s408
        $region68: #{tpu_custom_call.1} parent=63 // pred_fallthru
          _
      $region64: #{tpu_custom_call.1} parent=5 // pred_fallthru
        _
      %p410 = scmp.le.s32.totalorder 1, %s24
      %p411 = scmp.lt.s32.totalorder %s24, 3
      %p412 = pnand %p410, %p411
      %p413 = pneg %p412
      // Predicated region
      $region69: #{tpu_custom_call.1} parent=5 // pred_check
        _
      $region70: #{tpu_custom_call.1} parent=5 // pred_check_branch
        %415 = sbr.rel (%p412) target = $region72
      $region71: #{tpu_custom_call.1} parent=5 // pred_region
        %s416 = ssub.s32 %s24, 1
        // Predicated region
        $region73: #{tpu_custom_call.1} parent=71 // pred_check
          %p417 = pneg %p155
        $region74: #{tpu_custom_call.1} parent=71 // pred_check_branch
          %419 = sbr.rel (%p417) target = $region76
        $region75: #{tpu_custom_call.1} parent=71 // pred_region
          %420 = dma.done [#allocation3], 1024
        $region76: #{tpu_custom_call.1} parent=71 // pred_fallthru
          _
        // Predicated region
        $region77: #{tpu_custom_call.1} parent=71 // pred_check
          %p421 = pneg %p239
        $region78: #{tpu_custom_call.1} parent=71 // pred_check_branch
          %423 = sbr.rel (%p421) target = $region80
        $region79: #{tpu_custom_call.1} parent=71 // pred_region
          %424 = dma.done [#allocation6], 1024
        $region80: #{tpu_custom_call.1} parent=71 // pred_fallthru
          _
        %p425 = scmp.lt.s32.totalorder %s29, 1
        %s426 = scalar_select %p425, %s29, 1
        %s427 = smul.addr %s426, 8
        %s428 = scalar_lea.vmem %s0, %s427
        %p429 = pneg %p50
        %p430 = pneg %p47
        %p431 = pneg %p71
        %p432 = pneg %p68
        %p433 = pneg %p92
        %p434 = pneg %p89
        %p435 = pneg %p113
        %p436 = pneg %p110
        %p437 = pneg %p134
        %p438 = pneg %p131
        %p439 = pneg %p155
        %p440 = pneg %p152
        %p441 = pneg %p176
        %p442 = pneg %p173
        %p443 = pneg %p197
        %p444 = pneg %p194
        %p445 = pneg %p218
        %p446 = pneg %p215
        %p447 = pneg %p239
        %p448 = pneg %p236
        %p449 = pneg %p260
        %p450 = pneg %p257
        %p451 = pneg %p281
        %p452 = pneg %p278
        %p453 = pneg %p302
        %p454 = pneg %p299
        %p455 = pneg %p328
        %p456 = pneg %p325
        %s457 = sand.u32 %s315, 1
        %s458 = scalar_lea.sflag [#allocation4], %s457
        %s459 = sand.u32 %s315, 1
        %s460 = smul.addr %s459, 8
        %s461 = scalar_lea.vmem [#allocation7], %s460
        %p462 = scmp.lt.s32.totalorder %s29, 1
        %s463 = scalar_select %p462, %s29, 1
        %s464 = smul.addr %s463, 8
        %s465 = scalar_lea.vmem %s0, %s464
        %v467 = vld [vmem:[%s1] sm:$0xf]
        %v468 = vld [vmem:[%s2] sm:$0x1]
        %v469 = vld [vmem:[%s3] sm:$0x1]
        %v470 = vld [vmem:[%s4] sm:$0x1]
        %v471 = vld [vmem:[#allocation2] sm:$0xf]
        %v472 = vld [vmem:[#allocation2 + $0x4] sm:$0xf]
        %v473 = vld [vmem:[#allocation2 + $0x8] sm:$0xf]
        %v474 = vld [vmem:[#allocation2 + $0xc] sm:$0xf]
        %v475 = vld [vmem:[#allocation2 + $0x10] sm:$0xf]
        %v476 = vld [vmem:[#allocation2 + $0x14] sm:$0xf]
        %v477 = vld [vmem:[#allocation2 + $0x18] sm:$0xf]
        %v478 = vld [vmem:[#allocation2 + $0x1c] sm:$0xf]
        %v479 = vld [vmem:[#allocation2 + $0x20] sm:$0xf]
        %v480 = vld [vmem:[#allocation2 + $0x24] sm:$0xf]
        %v481 = vld [vmem:[#allocation2 + $0x28] sm:$0xf]
        %v482 = vld [vmem:[#allocation2 + $0x2c] sm:$0xf]
        %v483 = vld [vmem:[#allocation2 + $0x30] sm:$0xf]
        %v484 = vld [vmem:[#allocation2 + $0x34] sm:$0xf]
        %v485 = vld [vmem:[#allocation2 + $0x38] sm:$0xf]
        %v486 = vld [vmem:[#allocation2 + $0x3c] sm:$0xf]
        %v487 = vld [vmem:[%s6] sm:$0x1]
        %v488 = vld [vmem:[%s7] sm:$0x1]
        %v489 = vld [vmem:[%s8] sm:$0x1]
        %v490 = vld [vmem:[#allocation5] sm:$0xf]
        %v491 = vld [vmem:[#allocation5 + $0x4] sm:$0xf]
        %v492 = vld [vmem:[#allocation5 + $0x8] sm:$0xf]
        %v493 = vld [vmem:[#allocation5 + $0xc] sm:$0xf]
        %v494 = vld [vmem:[#allocation5 + $0x10] sm:$0xf]
        %v495 = vld [vmem:[#allocation5 + $0x14] sm:$0xf]
        %v496 = vld [vmem:[#allocation5 + $0x18] sm:$0xf]
        %v497 = vld [vmem:[#allocation5 + $0x1c] sm:$0xf]
        %v498 = vld [vmem:[#allocation5 + $0x20] sm:$0xf]
        %v499 = vld [vmem:[#allocation5 + $0x24] sm:$0xf]
        %v500 = vld [vmem:[#allocation5 + $0x28] sm:$0xf]
        %v501 = vld [vmem:[#allocation5 + $0x2c] sm:$0xf]
        %v502 = vld [vmem:[#allocation5 + $0x30] sm:$0xf]
        %v503 = vld [vmem:[#allocation5 + $0x34] sm:$0xf]
        %v504 = vld [vmem:[#allocation5 + $0x38] sm:$0xf]
        %v505 = vld [vmem:[#allocation5 + $0x3c] sm:$0xf]
        %v506 = vld [vmem:[%s10] sm:$0x1]
        %v507 = vld [vmem:[%s11] sm:$0x1]
        %v508 = vld [vmem:[%s12] sm:$0x1]
        %v509 = vld [vmem:[%s465] sm:$0xff]
        %v510 = vpack.c.bf16 %v509, %v509
        %v512 = vlaneseq
        %v513 = vshrl.u32 %v512, 7
        %v514 = vsub.s32 0, %v513
        %v515 = vrot.slane %v468, %v514
        %vm517 = vcmask 64512
        %v519 = vsel %vm517, %v510, 0
        %vm521 = vcmask 1043456
        %v523 = vsel %vm521, %v467, 0
        %525 = vmatprep.subr.bf16.mxu0 0
        %526 = vmatpush1.bf16.msra.mxu0 %v523
        %527 = vmatprep.subr.bf16.mxu0 0
        %528 = vmatpush1.bf16.msra.mxu0 0
        %529 = vmatprep.subr.bf16.mxu0 0
        %530 = vmatpush1.bf16.msra.mxu0 0
        %531 = vmatprep.subr.bf16.mxu0 0
        %532 = vmatpush1.bf16.msra.mxu0 0
        %533 = vmatprep.subr.bf16.mxu0 0
        %534 = vmatpush1.bf16.msra.mxu0 0
        %535 = vmatprep.subr.bf16.mxu0 0
        %536 = vmatpush1.bf16.msra.mxu0 0
        %537 = vmatprep.subr.bf16.mxu0 0
        %538 = vmatpush1.bf16.msra.mxu0 0
        %539 = vmatprep.subr.bf16.mxu0 0
        %540 = vmatpush1.bf16.msra.mxu0 0
        %541 = vmatprep.subr.bf16.mxu0 0
        %542 = vmatpush1.bf16.msra.mxu0 0
        %543 = vmatprep.subr.bf16.mxu0 0
        %544 = vmatpush1.bf16.msra.mxu0 0
        %545 = vmatprep.subr.bf16.mxu0 0
        %546 = vmatpush1.bf16.msra.mxu0 0
        %547 = vmatprep.subr.bf16.mxu0 0
        %548 = vmatpush1.bf16.msra.mxu0 0
        %549 = vmatprep.subr.bf16.mxu0 0
        %550 = vmatpush1.bf16.msra.mxu0 0
        %551 = vmatprep.subr.bf16.mxu0 0
        %552 = vmatpush1.bf16.msra.mxu0 0
        %553 = vmatprep.subr.bf16.mxu0 0
        %554 = vmatpush1.bf16.msra.mxu0 0
        %555 = vmatprep.subr.bf16.mxu0 0
        %556 = vmatpush1.bf16.msra.mxu0 0
        %557 = vmatprep.mubr.bf16.mxu0 0
        %558 = vmatmul.mubr.bf16.gmra.mrb[0].mxu0 %v519
        %v559 = vpop.f32.mrb[0].mxu0
        %v560 = vadd.f32 %v515, %v559
        %v561 = vpop.f32.mrb[0].mxu0
        %v562 = vpop.f32.mrb[0].mxu0
        %v563 = vpop.f32.mrb[0].mxu0
        %564 = vdwg.mxu0
        %565 = vadd.xlane.f32.xlu0 %v560
        %v566 = vpop.xlane.xlu0 %565
        %v567 = vmul.f32 %v566, 0.03125
        %v568 = vsub.f32 %v560, %v567
        %v569 = vmul.f32 %v568, %v568
        %570 = vadd.xlane.f32.xlu0 %v569
        %v571 = vpop.xlane.xlu0 %570
        %v572 = vmul.f32 %v567, %v567
        %v573 = vmul.f32 %v572, 96.0
        %v574 = vsub.f32 %v571, %v573
        %v575 = vmax.f32 %v574, 0.0
        %v576 = vmul.f32 %v575, 0.03125
        %v577 = vadd.f32 %v576, 1e-05
        %v578 = vrsqrt.pop %v577
        %v579 = vmul.f32 %v568, %v578
        %v581 = vlaneseq
        %v582 = vshrl.u32 %v581, 7
        %v583 = vsub.s32 0, %v582
        %v584 = vrot.slane %v469, %v583
        %v586 = vmul.f32 %v579, %v584
        %v588 = vlaneseq
        %v589 = vshrl.u32 %v588, 7
        %v590 = vsub.s32 0, %v589
        %v591 = vrot.slane %v470, %v590
        %v593 = vadd.f32 %v586, %v591
        %v594 = vmax.f32 %v593, 0.0
        %v595 = vpack.c.bf16 %v594, %v594
        %v597 = vlaneseq
        %v598 = vshrl.u32 %v597, 7
        %v599 = vsub.s32 0, %v598
        %v600 = vrot.slane %v487, %v599
        %v618 = vunpack.c.l.b16 %v471
        %v619 = vunpack.c.l.b16 %v472
        %v620 = vunpack.c.l.b16 %v473
        %v621 = vunpack.c.l.b16 %v474
        %v622 = vunpack.c.l.b16 %v475
        %v623 = vunpack.c.l.b16 %v476
        %v624 = vunpack.c.l.b16 %v477
        %v625 = vunpack.c.l.b16 %v478
        %v626 = vunpack.c.l.b16 %v479
        %v627 = vunpack.c.l.b16 %v480
        %v628 = vunpack.c.l.b16 %v481
        %v629 = vunpack.c.l.b16 %v482
        %v630 = vunpack.c.l.b16 %v483
        %v631 = vunpack.c.l.b16 %v484
        %v632 = vunpack.c.l.b16 %v485
        %v633 = vunpack.c.l.b16 %v486
        %v634 = vpack.c.b16 %v619, %v618
        %v635 = vpack.c.b16 %v621, %v620
        %v636 = vpack.c.b16 %v623, %v622
        %v637 = vpack.c.b16 %v625, %v624
        %v638 = vpack.c.b16 %v627, %v626
        %v639 = vpack.c.b16 %v629, %v628
        %v640 = vpack.c.b16 %v631, %v630
        %v641 = vpack.c.b16 %v633, %v632
        %650 = vmatprep.subr.bf16.mxu0 0
        %651 = vmatpush1.bf16.msra.mxu0 %v634
        %652 = vmatprep.subr.bf16.mxu0 0
        %653 = vmatpush1.bf16.msra.mxu0 %v635
        %654 = vmatprep.subr.bf16.mxu0 0
        %655 = vmatpush1.bf16.msra.mxu0 %v636
        %656 = vmatprep.subr.bf16.mxu0 0
        %657 = vmatpush1.bf16.msra.mxu0 %v637
        %658 = vmatprep.subr.bf16.mxu0 0
        %659 = vmatpush1.bf16.msra.mxu0 %v638
        %660 = vmatprep.subr.bf16.mxu0 0
        %661 = vmatpush1.bf16.msra.mxu0 %v639
        %662 = vmatprep.subr.bf16.mxu0 0
        %663 = vmatpush1.bf16.msra.mxu0 %v640
        %664 = vmatprep.subr.bf16.mxu0 0
        %665 = vmatpush1.bf16.msra.mxu0 %v641
        %666 = vmatprep.subr.bf16.mxu0 0
        %667 = vmatpush1.bf16.msra.mxu0 0
        %668 = vmatprep.subr.bf16.mxu0 0
        %669 = vmatpush1.bf16.msra.mxu0 0
        %670 = vmatprep.subr.bf16.mxu0 0
        %671 = vmatpush1.bf16.msra.mxu0 0
        %672 = vmatprep.subr.bf16.mxu0 0
        %673 = vmatpush1.bf16.msra.mxu0 0
        %674 = vmatprep.subr.bf16.mxu0 0
        %675 = vmatpush1.bf16.msra.mxu0 0
        %676 = vmatprep.subr.bf16.mxu0 0
        %677 = vmatpush1.bf16.msra.mxu0 0
        %678 = vmatprep.subr.bf16.mxu0 0
        %679 = vmatpush1.bf16.msra.mxu0 0
        %680 = vmatprep.subr.bf16.mxu0 0
        %681 = vmatpush1.bf16.msra.mxu0 0
        %682 = vmatprep.mubr.bf16.mxu0 0
        %683 = vmatmul.mubr.bf16.gmra.mrb[0].mxu0 %v595
        %v684 = vpop.f32.mrb[0].mxu0
        %v685 = vadd.f32 %v600, %v684
        %v686 = vpop.f32.mrb[0].mxu0
        %v687 = vpop.f32.mrb[0].mxu0
        %v688 = vpop.f32.mrb[0].mxu0
        %689 = vdwg.mxu0
        %690 = vadd.xlane.f32.xlu0 %v685
        %v691 = vpop.xlane.xlu0 %690
        %v692 = vmul.f32 %v691, 0.03125
        %v693 = vsub.f32 %v685, %v692
        %v694 = vmul.f32 %v693, %v693
        %695 = vadd.xlane.f32.xlu0 %v694
        %v696 = vpop.xlane.xlu0 %695
        %v697 = vmul.f32 %v692, %v692
        %v698 = vmul.f32 %v697, 96.0
        %v699 = vsub.f32 %v696, %v698
        %v700 = vmax.f32 %v699, 0.0
        %v701 = vmul.f32 %v700, 0.03125
        %v702 = vadd.f32 %v701, 1e-05
        %v703 = vrsqrt.pop %v702
        %v704 = vmul.f32 %v693, %v703
        %v706 = vlaneseq
        %v707 = vshrl.u32 %v706, 7
        %v708 = vsub.s32 0, %v707
        %v709 = vrot.slane %v488, %v708
        %v711 = vmul.f32 %v704, %v709
        %v713 = vlaneseq
        %v714 = vshrl.u32 %v713, 7
        %v715 = vsub.s32 0, %v714
        %v716 = vrot.slane %v489, %v715
        %v718 = vadd.f32 %v711, %v716
        %v719 = vmax.f32 %v718, 0.0
        %v720 = vpack.c.bf16 %v719, %v719
        %v722 = vlaneseq
        %v723 = vshrl.u32 %v722, 7
        %v724 = vsub.s32 0, %v723
        %v725 = vrot.slane %v506, %v724
        %v743 = vunpack.c.l.b16 %v490
        %v744 = vunpack.c.l.b16 %v491
        %v745 = vunpack.c.l.b16 %v492
        %v746 = vunpack.c.l.b16 %v493
        %v747 = vunpack.c.l.b16 %v494
        %v748 = vunpack.c.l.b16 %v495
        %v749 = vunpack.c.l.b16 %v496
        %v750 = vunpack.c.l.b16 %v497
        %v751 = vunpack.c.l.b16 %v498
        %v752 = vunpack.c.l.b16 %v499
        %v753 = vunpack.c.l.b16 %v500
        %v754 = vunpack.c.l.b16 %v501
        %v755 = vunpack.c.l.b16 %v502
        %v756 = vunpack.c.l.b16 %v503
        %v757 = vunpack.c.l.b16 %v504
        %v758 = vunpack.c.l.b16 %v505
        %v759 = vpack.c.b16 %v744, %v743
        %v760 = vpack.c.b16 %v746, %v745
        %v761 = vpack.c.b16 %v748, %v747
        %v762 = vpack.c.b16 %v750, %v749
        %v763 = vpack.c.b16 %v752, %v751
        %v764 = vpack.c.b16 %v754, %v753
        %v765 = vpack.c.b16 %v756, %v755
        %v766 = vpack.c.b16 %v758, %v757
        %775 = vmatprep.subr.bf16.mxu0 0
        %776 = vmatpush1.bf16.msra.mxu0 %v759
        %777 = vmatprep.subr.bf16.mxu0 0
        %778 = vmatpush1.bf16.msra.mxu0 %v760
        %779 = vmatprep.subr.bf16.mxu0 0
        %780 = vmatpush1.bf16.msra.mxu0 %v761
        %781 = vmatprep.subr.bf16.mxu0 0
        %782 = vmatpush1.bf16.msra.mxu0 %v762
        %783 = vmatprep.subr.bf16.mxu0 0
        %784 = vmatpush1.bf16.msra.mxu0 %v763
        %785 = vmatprep.subr.bf16.mxu0 0
        %786 = vmatpush1.bf16.msra.mxu0 %v764
        %787 = vmatprep.subr.bf16.mxu0 0
        %788 = vmatpush1.bf16.msra.mxu0 %v765
        %789 = vmatprep.subr.bf16.mxu0 0
        %790 = vmatpush1.bf16.msra.mxu0 %v766
        %791 = vmatprep.subr.bf16.mxu0 0
        %792 = vmatpush1.bf16.msra.mxu0 0
        %793 = vmatprep.subr.bf16.mxu0 0
        %794 = vmatpush1.bf16.msra.mxu0 0
        %795 = vmatprep.subr.bf16.mxu0 0
        %796 = vmatpush1.bf16.msra.mxu0 0
        %797 = vmatprep.subr.bf16.mxu0 0
        %798 = vmatpush1.bf16.msra.mxu0 0
        %799 = vmatprep.subr.bf16.mxu0 0
        %800 = vmatpush1.bf16.msra.mxu0 0
        %801 = vmatprep.subr.bf16.mxu0 0
        %802 = vmatpush1.bf16.msra.mxu0 0
        %803 = vmatprep.subr.bf16.mxu0 0
        %804 = vmatpush1.bf16.msra.mxu0 0
        %805 = vmatprep.subr.bf16.mxu0 0
        %806 = vmatpush1.bf16.msra.mxu0 0
        %807 = vmatprep.mubr.bf16.mxu0 0
        %808 = vmatmul.mubr.bf16.gmra.mrb[0].mxu0 %v720
        %v809 = vpop.f32.mrb[0].mxu0
        %v810 = vadd.f32 %v725, %v809
        %v811 = vpop.f32.mrb[0].mxu0
        %v812 = vpop.f32.mrb[0].mxu0
        %v813 = vpop.f32.mrb[0].mxu0
        %814 = vdwg.mxu0
        %815 = vadd.xlane.f32.xlu0 %v810
        %v816 = vpop.xlane.xlu0 %815
        %v817 = vmul.f32 %v816, 0.03125
        %v818 = vsub.f32 %v810, %v817
        %v819 = vmul.f32 %v818, %v818
        %820 = vadd.xlane.f32.xlu0 %v819
        %v821 = vpop.xlane.xlu0 %820
        %v822 = vmul.f32 %v817, %v817
        %v823 = vmul.f32 %v822, 96.0
        %v824 = vsub.f32 %v821, %v823
        %v825 = vmax.f32 %v824, 0.0
        %v826 = vmul.f32 %v825, 0.03125
        %v827 = vadd.f32 %v826, 1e-05
        %v828 = vrsqrt.pop %v827
        %v829 = vmul.f32 %v818, %v828
        %v831 = vlaneseq
        %v832 = vshrl.u32 %v831, 7
        %v833 = vsub.s32 0, %v832
        %v834 = vrot.slane %v507, %v833
        %v836 = vmul.f32 %v829, %v834
        %v838 = vlaneseq
        %v839 = vshrl.u32 %v838, 7
        %v840 = vsub.s32 0, %v839
        %v841 = vrot.slane %v508, %v840
        %v843 = vadd.f32 %v836, %v841
        %844 = vst [vmem:[%s461] sm:$0xff] %v843
        %s845 = sand.u32 %s315, 1
        %s846 = scalar_lea.sflag [#allocation4], %s845
        %s847 = sand.u32 %s315, 1
        %s848 = smul.addr %s847, 8
        %s849 = scalar_lea.vmem [#allocation7], %s848
        // Predicated region
        $region81: #{tpu_custom_call.1} parent=71 // pred_check
          %p850 = pneg %p325
        $region82: #{tpu_custom_call.1} parent=71 // pred_check_branch
          %852 = sbr.rel (%p850) target = $region84
        $region83: #{tpu_custom_call.1} parent=71 // pred_region
          %s854 = ssub.s32 128, 128
          %855 = vsyncadd %s846, %s854
          %s856 = smul.addr %s29, 128
          %s857 = scalar_lea.hbm %s13, %s856
          %s859 = sshll.u32 %s849, 4
          %s860 = int_to_ptr.vmem [resolvable:$true] %s859
          %862 = dma.vmem_to_hbm [thread:$0]  %s860, 128, %s857, %s846
        $region84: #{tpu_custom_call.1} parent=71 // pred_fallthru
          _
      $region72: #{tpu_custom_call.1} parent=5 // pred_fallthru
        _
      %p863 = scmp.le.s32.totalorder 2, %s24
      // Predicated region
      $region85: #{tpu_custom_call.1} parent=5 // pred_check
        %p864 = pneg %p863
      $region86: #{tpu_custom_call.1} parent=5 // pred_check_branch
        %866 = sbr.rel (%p864) target = $region88
      $region87: #{tpu_custom_call.1} parent=5 // pred_region
        %s867 = ssub.s32 %s24, 2
        // Predicated region
        $region89: #{tpu_custom_call.1} parent=87 // pred_check
          %p868 = pneg %p331
        $region90: #{tpu_custom_call.1} parent=87 // pred_check_branch
          %870 = sbr.rel (%p868) target = $region92
        $region91: #{tpu_custom_call.1} parent=87 // pred_region
          %s871 = sand.u32 %s316, 1
          %s872 = scalar_lea.sflag [#allocation4], %s871
          %s873 = sand.u32 %s316, 1
          %s874 = smul.addr %s873, 8
          %s875 = scalar_lea.vmem [#allocation7], %s874
          %876 = dma.done %s872, 128
        $region92: #{tpu_custom_call.1} parent=87 // pred_fallthru
          _
      $region88: #{tpu_custom_call.1} parent=5 // pred_fallthru
        _
    $region6: #{tpu_custom_call.1} parent=1 // loop_footer
      %s28 = sadd.s32 1, %s24
    $region7: #{tpu_custom_call.1} parent=1 // loop_footer_branch
      %23 = sbr.rel target = $region3
    $region8: #{tpu_custom_call.1} parent=1 // loop_exit
      _
    %877 = vsyncpa [#allocation3], 1
    %s878 = scalar_lea.sflag [#allocation3], 1
    %879 = vsyncpa %s878, 1
    %880 = vsyncpa [#allocation6], 1
    %881 = vsyncpa [#allocation4], 1
    %s882 = scalar_lea.sflag [#allocation4], 1
    %883 = vsyncpa %s882, 1

</llo_original>
